<compile_context>
chip_gen: v7x
topology: tpu7x:2x2x1
jax: 0.10.0
libtpu: 0.0.40
codegen_flags: <defaults>
</compile_context>

<pallas_src>
import numpy as np
import jax
import jax.numpy as jnp
from jax.experimental import pallas as pl
from jax.experimental.pallas import tpu as pltpu

# ---- hyper-parameters (stand-ins for cmd_args.*) -------------------------------------
NUM_GRAPHS      = 2     # batch of graphs
NODES_PER_GRAPH = 16
EDGES_PER_GRAPH = 16
NODE_DIM        = 8     # cmd_args.node_dim
EDGE_DIM        = 8     # cmd_args.edge_dim
LATENT_DIM      = 32    # cmd_args.latent_dim
OUT_DIM         = 32    # cmd_args.out_dim
HIDDEN1         = 32    # cmd_args.hidden1
HIDDEN2         = 32    # cmd_args.hidden2
NUM_CLASS       = 4     # cmd_args.num_class
MAX_LV          = 3     # cmd_args.max_lv
# cmd_args.do_bn assumed False (no batch-norm branch).

TOTAL_NODES  = NUM_GRAPHS * NODES_PER_GRAPH           # GN
TOTAL_EDGES2 = NUM_GRAPHS * 2 * EDGES_PER_GRAPH       # GE2 (directed edges)
CLASS_PAD    = 128          # lane-dense padded class axis for the last layer / output
MAX_NEG      = -1e9         # pad-class bias so padded classes vanish in log-softmax


def classifier_kernel(
    node_feat_ref, edge_feat_ref, n2n_ref, e2n_ref, subg_ref,
    w_n2l_ref, b_n2l_ref, w_e2l_ref, b_e2l_ref,
    w_conv_ref, b_conv_ref, w_out_ref, b_out_ref,
    w1_ref, b1_ref, w2_ref, b2_ref, w3_ref, b3_ref,
    logits_ref, logprob_ref,
):
    f32 = jnp.float32
    bf16 = jnp.bfloat16

    # hoist loads reused across the MAX_LV loop (one VMEM read each)
    n2n = n2n_ref[...]
    w_conv = w_conv_ref[...]

    # ---- EmbedMeanField (whole block-diagonal batch at once) ----
    # node linear
    input_node = jnp.dot(node_feat_ref[...], w_n2l_ref[...],
                         preferred_element_type=f32) + b_n2l_ref[...]

    # edge path, reassociated: e2n @ (edge_feat @ W + b)
    #   == (e2n @ edge_feat) @ W + rowsum(e2n) * b   (exact: contracts the big edge axis first)
    e2n = e2n_ref[...]
    pooled_edge = jnp.dot(e2n, edge_feat_ref[...], preferred_element_type=f32)  # (GN, ED)
    deg = jnp.sum(e2n.astype(f32), axis=-1, keepdims=True)                      # (GN, 1)
    e2npool = (jnp.dot(pooled_edge.astype(bf16), w_e2l_ref[...],
                       preferred_element_type=f32) + deg * b_e2l_ref[...])

    input_message = input_node + e2npool
    cur = jnp.maximum(input_message, 0.0)            # input_potential = relu(input_message)

    # conv bias hoisted out of the loop: relu(n2npool@W + b + msg) == relu(n2npool@W + (msg+b))
    msg_plus_bconv = input_message + b_conv_ref[...]

    for _ in range(MAX_LV):                          # mean-field message passing
        n2npool = jnp.dot(n2n, cur.astype(bf16), preferred_element_type=f32)
        node_lin = jnp.dot(n2npool.astype(bf16), w_conv, preferred_element_type=f32)
        cur = jnp.maximum(node_lin + msg_plus_bconv, 0.0)

    # per-graph sum pooling (subg_sp rows), then output projection + relu
    pooled = jnp.dot(subg_ref[...], cur.astype(bf16), preferred_element_type=f32)  # (G, LAT)
    embed = jnp.maximum(
        jnp.dot(pooled.astype(bf16), w_out_ref[...], preferred_element_type=f32)
        + b_out_ref[...], 0.0)

    # ---- MLPClassifier (batched over graphs) ----
    h1 = jnp.maximum(
        jnp.dot(embed.astype(bf16), w1_ref[...], preferred_element_type=f32) + b1_ref[...], 0.0)
    h2 = jnp.maximum(
        jnp.dot(h1.astype(bf16), w2_ref[...], preferred_element_type=f32) + b2_ref[...], 0.0)
    # final layer padded to 128 classes (pad columns: zero weights, -1e9 bias -> exp() == 0)
    logits = jnp.dot(h2.astype(bf16), w3_ref[...], preferred_element_type=f32) + b3_ref[...]

    # log_softmax over the (padded) class axis; pad classes contribute exactly 0 to the sum
    m = jnp.max(logits, axis=-1, keepdims=True)
    z = logits - m
    lse = jnp.log(jnp.sum(jnp.exp(z), axis=-1, keepdims=True))

    # lane-dense (G, 128) slabs
    logits_ref[...] = logits
    logprob_ref[...] = z - lse
    # TODO(synk): nll_loss against `labels` is skipped -- labels come from on-disk label.txt
    # files in PrepareFeatureLabel and have no in-kernel equivalent.


def _total_macs():
    n, e2 = TOTAL_NODES, TOTAL_EDGES2
    macs = n * NODE_DIM * LATENT_DIM                         # node_feat @ w_n2l
    macs += n * e2 * EDGE_DIM + n * EDGE_DIM * LATENT_DIM    # (e2n @ edge_feat) @ w_e2l
    macs += MAX_LV * (n * n * LATENT_DIM + n * LATENT_DIM * LATENT_DIM)
    macs += NUM_GRAPHS * n * LATENT_DIM                      # subgraph pooling
    macs += NUM_GRAPHS * (LATENT_DIM * OUT_DIM + OUT_DIM * HIDDEN1
                          + HIDDEN1 * HIDDEN2 + HIDDEN2 * CLASS_PAD)
    return macs


def classifier_forward(node_feat, edge_feat, n2n, e2n, subg, params):
    weights = (params["w_n2l"], params["b_n2l"], params["w_e2l"], params["b_e2l"],
               params["w_conv"], params["b_conv"], params["w_out"], params["b_out"],
               params["w1"], params["b1"], params["w2"], params["b2"],
               params["w3p"], params["b3p"])
    inputs = (node_feat, edge_feat, n2n, e2n, subg) + weights

    out_bytes = 2 * NUM_GRAPHS * CLASS_PAD * 4
    cost = pl.CostEstimate(
        flops=2 * _total_macs(),
        transcendentals=NUM_GRAPHS * (CLASS_PAD + 1),
        bytes_accessed=sum(int(a.size) * a.dtype.itemsize for a in inputs) + out_bytes,
    )

    # Whole batch in one invocation: no grid, every operand fully resident in VMEM
    # (total footprint is a few tens of KiB).
    logits_pad, logprob_pad = pl.pallas_call(
        classifier_kernel,
        out_shape=(jax.ShapeDtypeStruct((NUM_GRAPHS, CLASS_PAD), jnp.float32),
                   jax.ShapeDtypeStruct((NUM_GRAPHS, CLASS_PAD), jnp.float32)),
        compiler_params=pltpu.CompilerParams(vmem_limit_bytes=32 * 1024 * 1024),
        cost_estimate=cost,
    )(*inputs)

    return logits_pad[:, :NUM_CLASS], logprob_pad[:, :NUM_CLASS]


def reference_forward(node_feat, edge_feat, n2n, e2n, subg, params):
    """Pure-JAX reference mirroring the kernel math (same dtype casts)."""
    f32, bf16 = jnp.float32, jnp.bfloat16
    input_node = jnp.dot(node_feat, params["w_n2l"], preferred_element_type=f32) + params["b_n2l"]
    pooled_edge = jnp.dot(e2n, edge_feat, preferred_element_type=f32)
    deg = jnp.sum(e2n.astype(f32), axis=-1, keepdims=True)
    e2npool = (jnp.dot(pooled_edge.astype(bf16), params["w_e2l"], preferred_element_type=f32)
               + deg * params["b_e2l"])
    input_message = input_node + e2npool
    cur = jnp.maximum(input_message, 0.0)
    for _ in range(MAX_LV):
        n2npool = jnp.dot(n2n, cur.astype(bf16), preferred_element_type=f32)
        node_lin = jnp.dot(n2npool.astype(bf16), params["w_conv"], preferred_element_type=f32)
        cur = jnp.maximum(node_lin + input_message + params["b_conv"], 0.0)
    pooled = jnp.dot(subg, cur.astype(bf16), preferred_element_type=f32)
    embed = jnp.maximum(jnp.dot(pooled.astype(bf16), params["w_out"],
                                preferred_element_type=f32) + params["b_out"], 0.0)
    h1 = jnp.maximum(jnp.dot(embed.astype(bf16), params["w1"],
                             preferred_element_type=f32) + params["b1"], 0.0)
    h2 = jnp.maximum(jnp.dot(h1.astype(bf16), params["w2"],
                             preferred_element_type=f32) + params["b2"], 0.0)
    logits = jnp.dot(h2.astype(bf16), params["w3p"], preferred_element_type=f32) + params["b3p"]
    logprob = jax.nn.log_softmax(logits, axis=-1)
    return logits[:, :NUM_CLASS], logprob[:, :NUM_CLASS]


def make_params(key):
    ks = jax.random.split(key, 8)

    def lin(k, fan_in, fan_out):
        scale = 1.0 / np.sqrt(fan_in)
        w = jax.random.uniform(k, (fan_in, fan_out), jnp.float32, -scale, scale)
        b = jnp.zeros((1, fan_out), jnp.float32)
        return w, b

    w_n2l, b_n2l = lin(ks[0], NODE_DIM, LATENT_DIM)
    w_e2l, b_e2l = lin(ks[1], EDGE_DIM, LATENT_DIM)      # nn.Linear bias kept (exact)
    w_conv, b_conv = lin(ks[2], LATENT_DIM, LATENT_DIM)
    w_out, b_out = lin(ks[3], LATENT_DIM, OUT_DIM)
    w1, b1 = lin(ks[4], OUT_DIM, HIDDEN1)
    w2, b2 = lin(ks[5], HIDDEN1, HIDDEN2)
    w3, b3 = lin(ks[6], HIDDEN2, NUM_CLASS)

    # lane-dense padding of the final classifier layer: zero weights, -1e9 bias on pad classes
    w3p = jnp.zeros((HIDDEN2, CLASS_PAD), jnp.float32).at[:, :NUM_CLASS].set(w3)
    b3p = jnp.full((1, CLASS_PAD), MAX_NEG, jnp.float32).at[:, :NUM_CLASS].set(b3)

    bf16 = jnp.bfloat16
    return dict(
        w_n2l=w_n2l.astype(bf16), b_n2l=b_n2l,
        w_e2l=w_e2l.astype(bf16), b_e2l=b_e2l,
        w_conv=w_conv.astype(bf16), b_conv=b_conv,
        w_out=w_out.astype(bf16), b_out=b_out,
        w1=w1.astype(bf16), b1=b1,
        w2=w2.astype(bf16), b2=b2,
        w3p=w3p.astype(bf16), b3p=b3p,
    )


def make_graph_batch(key):
    """Dense block-diagonal stand-ins for the sparse graph-structure tensors."""
    N, E = NODES_PER_GRAPH, EDGES_PER_GRAPH
    n2n = np.zeros((TOTAL_NODES, TOTAL_NODES), np.float32)
    e2n = np.zeros((TOTAL_NODES, TOTAL_EDGES2), np.float32)
    subg = np.zeros((NUM_GRAPHS, TOTAL_NODES), np.float32)   # graph sum-pooling rows

    for g in range(NUM_GRAPHS):
        n0, e0 = g * N, g * 2 * E
        subg[g, n0:n0 + N] = 1.0
        for k in range(E):
            a = n0 + (k % N)
            b = n0 + ((k * 3 + 1) % N)
            n2n[a, b] = 1.0
            n2n[b, a] = 1.0
            ei = e0 + 2 * k
            # directed messages: edge ei goes a->b (lands on b), ei+1 goes b->a (lands on a)
            e2n[b, ei] = 1.0
            e2n[a, ei + 1] = 1.0

    k_node, k_edge = jax.random.split(key)
    node_ids = jax.random.randint(k_node, (TOTAL_NODES,), 0, NODE_DIM)
    edge_ids = jax.random.randint(k_edge, (TOTAL_EDGES2,), 0, EDGE_DIM)
    node_feat = jax.nn.one_hot(node_ids, NODE_DIM, dtype=jnp.bfloat16)   # exact in bf16
    edge_feat = jax.nn.one_hot(edge_ids, EDGE_DIM, dtype=jnp.bfloat16)
    return (node_feat, edge_feat,
            jnp.asarray(n2n, jnp.bfloat16), jnp.asarray(e2n, jnp.bfloat16),
            jnp.asarray(subg, jnp.bfloat16))


if __name__ == "__main__":
    key = jax.random.PRNGKey(0)
    k_params, k_graph = jax.random.split(key)

    params = make_params(k_params)
    node_feat, edge_feat, n2n, e2n, subg = make_graph_batch(k_graph)

    logits, log_probs = classifier_forward(node_feat, edge_feat, n2n, e2n, subg, params)
    jax.block_until_ready((logits, log_probs))

    assert logits.shape == (NUM_GRAPHS, NUM_CLASS)
    assert log_probs.shape == (NUM_GRAPHS, NUM_CLASS)
    assert bool(jnp.all(jnp.isfinite(logits))) and bool(jnp.all(jnp.isfinite(log_probs)))
    # log-probs over the real classes should normalize (pad classes contribute exactly 0)
    assert bool(jnp.all(jnp.abs(jnp.sum(jnp.exp(log_probs), axis=-1) - 1.0) < 1e-3))

    # pure-JAX reference check (same math / dtype casts; generous tolerance)
    ref_logits, ref_logprob = reference_forward(node_feat, edge_feat, n2n, e2n, subg, params)
    assert bool(jnp.max(jnp.abs(logits - ref_logits)) < 1e-1)
    assert bool(jnp.max(jnp.abs(log_probs - ref_logprob)) < 1e-1)

    print("KERNEL_OK")
</pallas_src>

<mosaic_0001>
module attributes {stable_mosaic.version = 11 : i64} {
  func.func @classifier_kernel(%arg0: memref<32x8xbf16, #tpu.memory_space<vmem>>, %arg1: memref<64x8xbf16, #tpu.memory_space<vmem>>, %arg2: memref<32x32xbf16, #tpu.memory_space<vmem>>, %arg3: memref<32x64xbf16, #tpu.memory_space<vmem>>, %arg4: memref<2x32xbf16, #tpu.memory_space<vmem>>, %arg5: memref<8x32xbf16, #tpu.memory_space<vmem>>, %arg6: memref<1x32xf32, #tpu.memory_space<vmem>>, %arg7: memref<8x32xbf16, #tpu.memory_space<vmem>>, %arg8: memref<1x32xf32, #tpu.memory_space<vmem>>, %arg9: memref<32x32xbf16, #tpu.memory_space<vmem>>, %arg10: memref<1x32xf32, #tpu.memory_space<vmem>>, %arg11: memref<32x32xbf16, #tpu.memory_space<vmem>>, %arg12: memref<1x32xf32, #tpu.memory_space<vmem>>, %arg13: memref<32x32xbf16, #tpu.memory_space<vmem>>, %arg14: memref<1x32xf32, #tpu.memory_space<vmem>>, %arg15: memref<32x32xbf16, #tpu.memory_space<vmem>>, %arg16: memref<1x32xf32, #tpu.memory_space<vmem>>, %arg17: memref<32x128xbf16, #tpu.memory_space<vmem>>, %arg18: memref<1x128xf32, #tpu.memory_space<vmem>>, %arg19: memref<2x128xf32, #tpu.memory_space<vmem>>, %arg20: memref<2x128xf32, #tpu.memory_space<vmem>>) attributes {dimension_semantics = [], scalar_prefetch = 0 : i64, scratch_operands = 0 : i64, tpu.core_type = #tpu.core_type<tc>} {
    %c0 = arith.constant 0 : index
    %c0_0 = arith.constant 0 : index
    %0 = vector.load %arg2[%c0, %c0_0] : memref<32x32xbf16, #tpu.memory_space<vmem>>, vector<32x32xbf16>
    %c0_1 = arith.constant 0 : index
    %c0_2 = arith.constant 0 : index
    %1 = vector.load %arg9[%c0_1, %c0_2] : memref<32x32xbf16, #tpu.memory_space<vmem>>, vector<32x32xbf16>
    %c0_3 = arith.constant 0 : index
    %c0_4 = arith.constant 0 : index
    %2 = vector.load %arg0[%c0_3, %c0_4] : memref<32x8xbf16, #tpu.memory_space<vmem>>, vector<32x8xbf16>
    %c0_5 = arith.constant 0 : index
    %c0_6 = arith.constant 0 : index
    %3 = vector.load %arg5[%c0_5, %c0_6] : memref<8x32xbf16, #tpu.memory_space<vmem>>, vector<8x32xbf16>
    %cst = arith.constant dense<0.000000e+00> : vector<32x32xf32>
    %4 = tpu.matmul %2, %3, %cst {dimension_numbers = #tpu.dot_dimension_numbers<[1], [0], [0], [1], [0, 0, 1, 1], [], []>} : vector<32x8xbf16>, vector<8x32xbf16>, vector<32x32xf32> -> vector<32x32xf32>
    %c0_7 = arith.constant 0 : index
    %c0_8 = arith.constant 0 : index
    %5 = vector.load %arg6[%c0_7, %c0_8] : memref<1x32xf32, #tpu.memory_space<vmem>>, vector<1x32xf32>
    %6 = vector.broadcast %5 : vector<1x32xf32> to vector<32x32xf32>
    %7 = arith.addf %4, %6 : vector<32x32xf32>
    %c0_9 = arith.constant 0 : index
    %c0_10 = arith.constant 0 : index
    %8 = vector.load %arg3[%c0_9, %c0_10] : memref<32x64xbf16, #tpu.memory_space<vmem>>, vector<32x64xbf16>
    %c0_11 = arith.constant 0 : index
    %c0_12 = arith.constant 0 : index
    %9 = vector.load %arg1[%c0_11, %c0_12] : memref<64x8xbf16, #tpu.memory_space<vmem>>, vector<64x8xbf16>
    %cst_13 = arith.constant dense<0.000000e+00> : vector<32x8xf32>
    %10 = tpu.matmul %8, %9, %cst_13 {dimension_numbers = #tpu.dot_dimension_numbers<[1], [0], [0], [1], [0, 0, 1, 1], [], []>} : vector<32x64xbf16>, vector<64x8xbf16>, vector<32x8xf32> -> vector<32x8xf32>
    %11 = arith.extf %8 : vector<32x64xbf16> to vector<32x64xf32>
    %cst_14 = arith.constant dense<0.000000e+00> : vector<32xf32>
    %12 = vector.multi_reduction <add>, %11, %cst_14 [1] : vector<32x64xf32> to vector<32xf32>
    %13 = vector.shape_cast %12 : vector<32xf32> to vector<32x1xf32>
    %14 = arith.truncf %10 : vector<32x8xf32> to vector<32x8xbf16>
    %c0_15 = arith.constant 0 : index
    %c0_16 = arith.constant 0 : index
    %15 = vector.load %arg7[%c0_15, %c0_16] : memref<8x32xbf16, #tpu.memory_space<vmem>>, vector<8x32xbf16>
    %cst_17 = arith.constant dense<0.000000e+00> : vector<32x32xf32>
    %16 = tpu.matmul %14, %15, %cst_17 {dimension_numbers = #tpu.dot_dimension_numbers<[1], [0], [0], [1], [0, 0, 1, 1], [], []>} : vector<32x8xbf16>, vector<8x32xbf16>, vector<32x32xf32> -> vector<32x32xf32>
    %c0_18 = arith.constant 0 : index
    %c0_19 = arith.constant 0 : index
    %17 = vector.load %arg8[%c0_18, %c0_19] : memref<1x32xf32, #tpu.memory_space<vmem>>, vector<1x32xf32>
    %18 = vector.broadcast %13 : vector<32x1xf32> to vector<32x32xf32>
    %19 = vector.broadcast %17 : vector<1x32xf32> to vector<32x32xf32>
    %20 = arith.mulf %18, %19 : vector<32x32xf32>
    %21 = arith.addf %16, %20 : vector<32x32xf32>
    %22 = arith.addf %7, %21 : vector<32x32xf32>
    %cst_20 = arith.constant 0.000000e+00 : f32
    %23 = vector.broadcast %cst_20 : f32 to vector<32x32xf32>
    %24 = arith.maximumf %22, %23 : vector<32x32xf32>
    %c0_21 = arith.constant 0 : index
    %c0_22 = arith.constant 0 : index
    %25 = vector.load %arg10[%c0_21, %c0_22] : memref<1x32xf32, #tpu.memory_space<vmem>>, vector<1x32xf32>
    %26 = vector.broadcast %25 : vector<1x32xf32> to vector<32x32xf32>
    %27 = arith.addf %22, %26 : vector<32x32xf32>
    %28 = arith.truncf %24 : vector<32x32xf32> to vector<32x32xbf16>
    %cst_23 = arith.constant dense<0.000000e+00> : vector<32x32xf32>
    %29 = tpu.matmul %0, %28, %cst_23 {dimension_numbers = #tpu.dot_dimension_numbers<[1], [0], [0], [1], [0, 0, 1, 1], [], []>} : vector<32x32xbf16>, vector<32x32xbf16>, vector<32x32xf32> -> vector<32x32xf32>
    %30 = arith.truncf %29 : vector<32x32xf32> to vector<32x32xbf16>
    %cst_24 = arith.constant dense<0.000000e+00> : vector<32x32xf32>
    %31 = tpu.matmul %30, %1, %cst_24 {dimension_numbers = #tpu.dot_dimension_numbers<[1], [0], [0], [1], [0, 0, 1, 1], [], []>} : vector<32x32xbf16>, vector<32x32xbf16>, vector<32x32xf32> -> vector<32x32xf32>
    %32 = arith.addf %31, %27 : vector<32x32xf32>
    %cst_25 = arith.constant 0.000000e+00 : f32
    %33 = vector.broadcast %cst_25 : f32 to vector<32x32xf32>
    %34 = arith.maximumf %32, %33 : vector<32x32xf32>
    %35 = arith.truncf %34 : vector<32x32xf32> to vector<32x32xbf16>
    %cst_26 = arith.constant dense<0.000000e+00> : vector<32x32xf32>
    %36 = tpu.matmul %0, %35, %cst_26 {dimension_numbers = #tpu.dot_dimension_numbers<[1], [0], [0], [1], [0, 0, 1, 1], [], []>} : vector<32x32xbf16>, vector<32x32xbf16>, vector<32x32xf32> -> vector<32x32xf32>
    %37 = arith.truncf %36 : vector<32x32xf32> to vector<32x32xbf16>
    %cst_27 = arith.constant dense<0.000000e+00> : vector<32x32xf32>
    %38 = tpu.matmul %37, %1, %cst_27 {dimension_numbers = #tpu.dot_dimension_numbers<[1], [0], [0], [1], [0, 0, 1, 1], [], []>} : vector<32x32xbf16>, vector<32x32xbf16>, vector<32x32xf32> -> vector<32x32xf32>
    %39 = arith.addf %38, %27 : vector<32x32xf32>
    %cst_28 = arith.constant 0.000000e+00 : f32
    %40 = vector.broadcast %cst_28 : f32 to vector<32x32xf32>
    %41 = arith.maximumf %39, %40 : vector<32x32xf32>
    %42 = arith.truncf %41 : vector<32x32xf32> to vector<32x32xbf16>
    %cst_29 = arith.constant dense<0.000000e+00> : vector<32x32xf32>
    %43 = tpu.matmul %0, %42, %cst_29 {dimension_numbers = #tpu.dot_dimension_numbers<[1], [0], [0], [1], [0, 0, 1, 1], [], []>} : vector<32x32xbf16>, vector<32x32xbf16>, vector<32x32xf32> -> vector<32x32xf32>
    %44 = arith.truncf %43 : vector<32x32xf32> to vector<32x32xbf16>
    %cst_30 = arith.constant dense<0.000000e+00> : vector<32x32xf32>
    %45 = tpu.matmul %44, %1, %cst_30 {dimension_numbers = #tpu.dot_dimension_numbers<[1], [0], [0], [1], [0, 0, 1, 1], [], []>} : vector<32x32xbf16>, vector<32x32xbf16>, vector<32x32xf32> -> vector<32x32xf32>
    %46 = arith.addf %45, %27 : vector<32x32xf32>
    %cst_31 = arith.constant 0.000000e+00 : f32
    %47 = vector.broadcast %cst_31 : f32 to vector<32x32xf32>
    %48 = arith.maximumf %46, %47 : vector<32x32xf32>
    %c0_32 = arith.constant 0 : index
    %c0_33 = arith.constant 0 : index
    %49 = vector.load %arg4[%c0_32, %c0_33] : memref<2x32xbf16, #tpu.memory_space<vmem>>, vector<2x32xbf16>
    %50 = arith.truncf %48 : vector<32x32xf32> to vector<32x32xbf16>
    %cst_34 = arith.constant dense<0.000000e+00> : vector<2x32xf32>
    %51 = tpu.matmul %49, %50, %cst_34 {dimension_numbers = #tpu.dot_dimension_numbers<[1], [0], [0], [1], [0, 0, 1, 1], [], []>} : vector<2x32xbf16>, vector<32x32xbf16>, vector<2x32xf32> -> vector<2x32xf32>
    %52 = arith.truncf %51 : vector<2x32xf32> to vector<2x32xbf16>
    %c0_35 = arith.constant 0 : index
    %c0_36 = arith.constant 0 : index
    %53 = vector.load %arg11[%c0_35, %c0_36] : memref<32x32xbf16, #tpu.memory_space<vmem>>, vector<32x32xbf16>
    %cst_37 = arith.constant dense<0.000000e+00> : vector<2x32xf32>
    %54 = tpu.matmul %52, %53, %cst_37 {dimension_numbers = #tpu.dot_dimension_numbers<[1], [0], [0], [1], [0, 0, 1, 1], [], []>} : vector<2x32xbf16>, vector<32x32xbf16>, vector<2x32xf32> -> vector<2x32xf32>
    %c0_38 = arith.constant 0 : index
    %c0_39 = arith.constant 0 : index
    %55 = vector.load %arg12[%c0_38, %c0_39] : memref<1x32xf32, #tpu.memory_space<vmem>>, vector<1x32xf32>
    %56 = vector.broadcast %55 : vector<1x32xf32> to vector<2x32xf32>
    %57 = arith.addf %54, %56 : vector<2x32xf32>
    %cst_40 = arith.constant 0.000000e+00 : f32
    %58 = vector.broadcast %cst_40 : f32 to vector<2x32xf32>
    %59 = arith.maximumf %57, %58 : vector<2x32xf32>
    %60 = arith.truncf %59 : vector<2x32xf32> to vector<2x32xbf16>
    %c0_41 = arith.constant 0 : index
    %c0_42 = arith.constant 0 : index
    %61 = vector.load %arg13[%c0_41, %c0_42] : memref<32x32xbf16, #tpu.memory_space<vmem>>, vector<32x32xbf16>
    %cst_43 = arith.constant dense<0.000000e+00> : vector<2x32xf32>
    %62 = tpu.matmul %60, %61, %cst_43 {dimension_numbers = #tpu.dot_dimension_numbers<[1], [0], [0], [1], [0, 0, 1, 1], [], []>} : vector<2x32xbf16>, vector<32x32xbf16>, vector<2x32xf32> -> vector<2x32xf32>
    %c0_44 = arith.constant 0 : index
    %c0_45 = arith.constant 0 : index
    %63 = vector.load %arg14[%c0_44, %c0_45] : memref<1x32xf32, #tpu.memory_space<vmem>>, vector<1x32xf32>
    %64 = vector.broadcast %63 : vector<1x32xf32> to vector<2x32xf32>
    %65 = arith.addf %62, %64 : vector<2x32xf32>
    %cst_46 = arith.constant 0.000000e+00 : f32
    %66 = vector.broadcast %cst_46 : f32 to vector<2x32xf32>
    %67 = arith.maximumf %65, %66 : vector<2x32xf32>
    %68 = arith.truncf %67 : vector<2x32xf32> to vector<2x32xbf16>
    %c0_47 = arith.constant 0 : index
    %c0_48 = arith.constant 0 : index
    %69 = vector.load %arg15[%c0_47, %c0_48] : memref<32x32xbf16, #tpu.memory_space<vmem>>, vector<32x32xbf16>
    %cst_49 = arith.constant dense<0.000000e+00> : vector<2x32xf32>
    %70 = tpu.matmul %68, %69, %cst_49 {dimension_numbers = #tpu.dot_dimension_numbers<[1], [0], [0], [1], [0, 0, 1, 1], [], []>} : vector<2x32xbf16>, vector<32x32xbf16>, vector<2x32xf32> -> vector<2x32xf32>
    %c0_50 = arith.constant 0 : index
    %c0_51 = arith.constant 0 : index
    %71 = vector.load %arg16[%c0_50, %c0_51] : memref<1x32xf32, #tpu.memory_space<vmem>>, vector<1x32xf32>
    %72 = vector.broadcast %71 : vector<1x32xf32> to vector<2x32xf32>
    %73 = arith.addf %70, %72 : vector<2x32xf32>
    %cst_52 = arith.constant 0.000000e+00 : f32
    %74 = vector.broadcast %cst_52 : f32 to vector<2x32xf32>
    %75 = arith.maximumf %73, %74 : vector<2x32xf32>
    %76 = arith.truncf %75 : vector<2x32xf32> to vector<2x32xbf16>
    %c0_53 = arith.constant 0 : index
    %c0_54 = arith.constant 0 : index
    %77 = vector.load %arg17[%c0_53, %c0_54] : memref<32x128xbf16, #tpu.memory_space<vmem>>, vector<32x128xbf16>
    %cst_55 = arith.constant dense<0.000000e+00> : vector<2x128xf32>
    %78 = tpu.matmul %76, %77, %cst_55 {dimension_numbers = #tpu.dot_dimension_numbers<[1], [0], [0], [1], [0, 0, 1, 1], [], []>} : vector<2x32xbf16>, vector<32x128xbf16>, vector<2x128xf32> -> vector<2x128xf32>
    %c0_56 = arith.constant 0 : index
    %c0_57 = arith.constant 0 : index
    %79 = vector.load %arg18[%c0_56, %c0_57] : memref<1x128xf32, #tpu.memory_space<vmem>>, vector<1x128xf32>
    %80 = vector.broadcast %79 : vector<1x128xf32> to vector<2x128xf32>
    %81 = arith.addf %78, %80 : vector<2x128xf32>
    %cst_58 = arith.constant dense<0xFF800000> : vector<2xf32>
    %82 = vector.multi_reduction <maximumf>, %81, %cst_58 [1] : vector<2x128xf32> to vector<2xf32>
    %83 = vector.shape_cast %82 : vector<2xf32> to vector<2x1xf32>
    %84 = vector.broadcast %83 : vector<2x1xf32> to vector<2x128xf32>
    %85 = arith.subf %81, %84 : vector<2x128xf32>
    %86 = math.exp %85 : vector<2x128xf32>
    %cst_59 = arith.constant dense<0.000000e+00> : vector<2xf32>
    %87 = vector.multi_reduction <add>, %86, %cst_59 [1] : vector<2x128xf32> to vector<2xf32>
    %88 = vector.shape_cast %87 : vector<2xf32> to vector<2x1xf32>
    %89 = math.log %88 : vector<2x1xf32>
    %c0_60 = arith.constant 0 : index
    %c0_61 = arith.constant 0 : index
    %90 = vector.load %arg19[%c0_60, %c0_61] : memref<2x128xf32, #tpu.memory_space<vmem>>, vector<2x128xf32>
    tpu.vector_store %arg19[%c0_60, %c0_61], %81 {strides = array<i32>} : memref<2x128xf32, #tpu.memory_space<vmem>>, vector<2x128xf32>,
    %91 = vector.broadcast %89 : vector<2x1xf32> to vector<2x128xf32>
    %92 = arith.subf %85, %91 : vector<2x128xf32>
    %c0_62 = arith.constant 0 : index
    %c0_63 = arith.constant 0 : index
    %93 = vector.load %arg20[%c0_62, %c0_63] : memref<2x128xf32, #tpu.memory_space<vmem>>, vector<2x128xf32>
    tpu.vector_store %arg20[%c0_62, %c0_63], %92 {strides = array<i32>} : memref<2x128xf32, #tpu.memory_space<vmem>>, vector<2x128xf32>,
    return
  }
}

</mosaic_0001>

<llo_original>
// kernel: tpu_custom_call.1
$region0: #{tpu_custom_call.1}
  #allocation0 [shape = 'u32[]', space=smem, size = 0x4, offset = 0x4, fixed_abs, tag = 'smem constant byte address 0x4 - core index']
  #allocation1 [shape = 'u32[144,128]{1,0:T(1,128)}', space=vmem, size = 0x12000, scoped, tag = 'internal scratch']
  %s0 = inlined_call_operand.vmem [shape: bf16[32,8], index: 0, kind: input, shape index: {}]
  %s1 = inlined_call_operand.vmem [shape: bf16[64,8], index: 1, kind: input, shape index: {}]
  %s2 = inlined_call_operand.vmem [shape: bf16[32,32], index: 2, kind: input, shape index: {}]
  %s3 = inlined_call_operand.vmem [shape: bf16[32,64], index: 3, kind: input, shape index: {}]
  %s4 = inlined_call_operand.hbm [shape: bf16[2,32], index: 4, kind: input, shape index: {}]
  %s5 = inlined_call_operand.hbm [shape: bf16[8,32], index: 5, kind: input, shape index: {}]
  %s6 = inlined_call_operand.hbm [shape: f32[1,32], index: 6, kind: input, shape index: {}]
  %s7 = inlined_call_operand.hbm [shape: bf16[8,32], index: 7, kind: input, shape index: {}]
  %s8 = inlined_call_operand.hbm [shape: f32[1,32], index: 8, kind: input, shape index: {}]
  %s9 = inlined_call_operand.vmem [shape: bf16[32,32], index: 9, kind: input, shape index: {}]
  %s10 = inlined_call_operand.hbm [shape: f32[1,32], index: 10, kind: input, shape index: {}]
  %s11 = inlined_call_operand.vmem [shape: bf16[32,32], index: 11, kind: input, shape index: {}]
  %s12 = inlined_call_operand.hbm [shape: f32[1,32], index: 12, kind: input, shape index: {}]
  %s13 = inlined_call_operand.vmem [shape: bf16[32,32], index: 13, kind: input, shape index: {}]
  %s14 = inlined_call_operand.hbm [shape: f32[1,32], index: 14, kind: input, shape index: {}]
  %s15 = inlined_call_operand.vmem [shape: bf16[32,32], index: 15, kind: input, shape index: {}]
  %s16 = inlined_call_operand.vmem [shape: f32[1,32], index: 16, kind: input, shape index: {}]
  %s17 = inlined_call_operand.vmem [shape: bf16[32,128], index: 17, kind: input, shape index: {}]
  %s18 = inlined_call_operand.vmem [shape: f32[1,128], index: 18, kind: input, shape index: {}]
  %s19 = inlined_call_operand.hbm [shape: f32[2,128], index: 19, kind: output, shape index: {0}]
  %s20 = inlined_call_operand.hbm [shape: f32[2,128], index: 20, kind: output, shape index: {1}]
  %21 = xla_tuple %s19, %s20
  %s22 = sld [smem:[#allocation0]]
  $region126: #{tpu_custom_call.1} parent=0
    _
  %s24 = ssub.s32 1, %s22
  %s25 = scalar_select 0, %s24, %s22
  $region1: #{tpu_custom_call.1} parent=0
    #allocation2 [shape = 'u8[512]{0}', space=vmem, size = 0x400, scoped, tag = 'input window, operand 4, single buffered']
    #allocation3 [shape = 's32[1]{0}', space=sflag, size = 0x4, scoped, tag = 'scoped memory for tpu_custom_call.1']
    #allocation4 [shape = 's32[1]{0}', space=sflag, size = 0x4, scoped, tag = 'scoped memory for tpu_custom_call.1']
    #allocation5 [shape = 'u8[2048]{0}', space=vmem, size = 0x800, scoped, tag = 'input window, operand 5, single buffered']
    #allocation6 [shape = 's32[1]{0}', space=sflag, size = 0x4, scoped, tag = 'scoped memory for tpu_custom_call.1']
    #allocation7 [shape = 'u8[512]{0}', space=vmem, size = 0x400, scoped, tag = 'input window, operand 6, single buffered']
    #allocation8 [shape = 'u8[2048]{0}', space=vmem, size = 0x800, scoped, tag = 'input window, operand 7, single buffered']
    #allocation9 [shape = 's32[1]{0}', space=sflag, size = 0x4, scoped, tag = 'scoped memory for tpu_custom_call.1']
    #allocation10 [shape = 'u8[512]{0}', space=vmem, size = 0x400, scoped, tag = 'input window, operand 8, single buffered']
    #allocation11 [shape = 'u8[512]{0}', space=vmem, size = 0x400, scoped, tag = 'input window, operand 10, single buffered']
    #allocation12 [shape = 's32[1]{0}', space=sflag, size = 0x4, scoped, tag = 'scoped memory for tpu_custom_call.1']
    #allocation13 [shape = 'u8[512]{0}', space=vmem, size = 0x400, scoped, tag = 'input window, operand 12, single buffered']
    #allocation14 [shape = 'u8[512]{0}', space=vmem, size = 0x400, scoped, tag = 'input window, operand 14, single buffered']
    #allocation15 [shape = 's32[1]{0}', space=sflag, size = 0x4, scoped, tag = 'scoped memory for tpu_custom_call.1']
    #allocation16 [shape = 'u8[1024]{0}', space=vmem, size = 0x400, scoped, tag = 'output window, operand 0, single buffered']
    #allocation17 [shape = 'u8[1024]{0}', space=vmem, size = 0x400, scoped, tag = 'output window, operand 1, single buffered']
    #allocation18 [shape = 's32[1]{0}', space=sflag, size = 0x4, scoped, tag = 'scoped memory for tpu_custom_call.1']
    %26 = vsyncpa [#allocation3], 0
    %27 = vsyncpa [#allocation6], 0
    %28 = vsyncpa [#allocation9], 0
    %29 = vsyncpa [#allocation12], 0
    %30 = vsyncpa [#allocation15], 0
    %31 = vsyncpa [#allocation4], 0
    %32 = vsyncpa [#allocation18], 0
    // Predicated region
    $region2: #{tpu_custom_call.1} parent=1 // pred_check
      _
    $region3: #{tpu_custom_call.1} parent=1 // pred_check_branch
      %34 = sbr.rel (0) target = $region5
    $region4: #{tpu_custom_call.1} parent=1 // pred_region
      _
    $region5: #{tpu_custom_call.1} parent=1 // pred_fallthru
      _
    // Predicated region
    $region6: #{tpu_custom_call.1} parent=1 // pred_check
      _
    $region7: #{tpu_custom_call.1} parent=1 // pred_check_branch
      %36 = sbr.rel (0) target = $region9
    $region8: #{tpu_custom_call.1} parent=1 // pred_region
      _
    $region9: #{tpu_custom_call.1} parent=1 // pred_fallthru
      _
    // Predicated region
    $region10: #{tpu_custom_call.1} parent=1 // pred_check
      _
    $region11: #{tpu_custom_call.1} parent=1 // pred_check_branch
      %38 = sbr.rel (0) target = $region13
    $region12: #{tpu_custom_call.1} parent=1 // pred_region
      _
    $region13: #{tpu_custom_call.1} parent=1 // pred_fallthru
      _
    // Predicated region
    $region14: #{tpu_custom_call.1} parent=1 // pred_check
      _
    $region15: #{tpu_custom_call.1} parent=1 // pred_check_branch
      %40 = sbr.rel (0) target = $region17
    $region16: #{tpu_custom_call.1} parent=1 // pred_region
      _
    $region17: #{tpu_custom_call.1} parent=1 // pred_fallthru
      _
    // Predicated region
    $region18: #{tpu_custom_call.1} parent=1 // pred_check
      _
    $region19: #{tpu_custom_call.1} parent=1 // pred_check_branch
      %42 = sbr.rel (0) target = $region21
    $region20: #{tpu_custom_call.1} parent=1 // pred_region
      %s44 = ssub.s32 16, 16
      %45 = vsyncadd [#allocation3], %s44
      %s47 = sshll.u32 [#allocation2], 4
      %s48 = int_to_ptr.vmem [resolvable:$true] %s47
      %50 = dma.hbm_to_vmem [thread:$0]  %s4, 16, %s48, [#allocation3]
    $region21: #{tpu_custom_call.1} parent=1 // pred_fallthru
      _
    // Predicated region
    $region22: #{tpu_custom_call.1} parent=1 // pred_check
      _
    $region23: #{tpu_custom_call.1} parent=1 // pred_check_branch
      %52 = sbr.rel (0) target = $region25
    $region24: #{tpu_custom_call.1} parent=1 // pred_region
      %s54 = ssub.s32 64, 64
      %55 = vsyncadd [#allocation6], %s54
      %s57 = sshll.u32 [#allocation5], 4
      %s58 = int_to_ptr.vmem [resolvable:$true] %s57
      %60 = dma.hbm_to_vmem [thread:$0]  %s5, 64, %s58, [#allocation6]
    $region25: #{tpu_custom_call.1} parent=1 // pred_fallthru
      _
    // Predicated region
    $region26: #{tpu_custom_call.1} parent=1 // pred_check
      _
    $region27: #{tpu_custom_call.1} parent=1 // pred_check_branch
      %62 = sbr.rel (0) target = $region29
    $region28: #{tpu_custom_call.1} parent=1 // pred_region
      %s64 = ssub.s32 16, 16
      %65 = vsyncadd [#allocation6], %s64
      %s67 = sshll.u32 [#allocation7], 4
      %s68 = int_to_ptr.vmem [resolvable:$true] %s67
      %70 = dma.hbm_to_vmem [thread:$0]  %s6, 16, %s68, [#allocation6]
    $region29: #{tpu_custom_call.1} parent=1 // pred_fallthru
      _
    // Predicated region
    $region30: #{tpu_custom_call.1} parent=1 // pred_check
      _
    $region31: #{tpu_custom_call.1} parent=1 // pred_check_branch
      %72 = sbr.rel (0) target = $region33
    $region32: #{tpu_custom_call.1} parent=1 // pred_region
      %s74 = ssub.s32 64, 64
      %75 = vsyncadd [#allocation9], %s74
      %s77 = sshll.u32 [#allocation8], 4
      %s78 = int_to_ptr.vmem [resolvable:$true] %s77
      %80 = dma.hbm_to_vmem [thread:$0]  %s7, 64, %s78, [#allocation9]
    $region33: #{tpu_custom_call.1} parent=1 // pred_fallthru
      _
    // Predicated region
    $region34: #{tpu_custom_call.1} parent=1 // pred_check
      _
    $region35: #{tpu_custom_call.1} parent=1 // pred_check_branch
      %82 = sbr.rel (0) target = $region37
    $region36: #{tpu_custom_call.1} parent=1 // pred_region
      %s84 = ssub.s32 16, 16
      %85 = vsyncadd [#allocation9], %s84
      %s87 = sshll.u32 [#allocation10], 4
      %s88 = int_to_ptr.vmem [resolvable:$true] %s87
      %90 = dma.hbm_to_vmem [thread:$0]  %s8, 16, %s88, [#allocation9]
    $region37: #{tpu_custom_call.1} parent=1 // pred_fallthru
      _
    // Predicated region
    $region38: #{tpu_custom_call.1} parent=1 // pred_check
      _
    $region39: #{tpu_custom_call.1} parent=1 // pred_check_branch
      %92 = sbr.rel (0) target = $region41
    $region40: #{tpu_custom_call.1} parent=1 // pred_region
      _
    $region41: #{tpu_custom_call.1} parent=1 // pred_fallthru
      _
    // Predicated region
    $region42: #{tpu_custom_call.1} parent=1 // pred_check
      _
    $region43: #{tpu_custom_call.1} parent=1 // pred_check_branch
      %94 = sbr.rel (0) target = $region45
    $region44: #{tpu_custom_call.1} parent=1 // pred_region
      %s96 = ssub.s32 16, 16
      %97 = vsyncadd [#allocation12], %s96
      %s99 = sshll.u32 [#allocation11], 4
      %s100 = int_to_ptr.vmem [resolvable:$true] %s99
      %102 = dma.hbm_to_vmem [thread:$0]  %s10, 16, %s100, [#allocation12]
    $region45: #{tpu_custom_call.1} parent=1 // pred_fallthru
      _
    // Predicated region
    $region46: #{tpu_custom_call.1} parent=1 // pred_check
      _
    $region47: #{tpu_custom_call.1} parent=1 // pred_check_branch
      %104 = sbr.rel (0) target = $region49
    $region48: #{tpu_custom_call.1} parent=1 // pred_region
      _
    $region49: #{tpu_custom_call.1} parent=1 // pred_fallthru
      _
    // Predicated region
    $region50: #{tpu_custom_call.1} parent=1 // pred_check
      _
    $region51: #{tpu_custom_call.1} parent=1 // pred_check_branch
      %106 = sbr.rel (0) target = $region53
    $region52: #{tpu_custom_call.1} parent=1 // pred_region
      %s108 = ssub.s32 16, 16
      %109 = vsyncadd [#allocation12], %s108
      %s111 = sshll.u32 [#allocation13], 4
      %s112 = int_to_ptr.vmem [resolvable:$true] %s111
      %114 = dma.hbm_to_vmem [thread:$0]  %s12, 16, %s112, [#allocation12]
    $region53: #{tpu_custom_call.1} parent=1 // pred_fallthru
      _
    // Predicated region
    $region54: #{tpu_custom_call.1} parent=1 // pred_check
      _
    $region55: #{tpu_custom_call.1} parent=1 // pred_check_branch
      %116 = sbr.rel (0) target = $region57
    $region56: #{tpu_custom_call.1} parent=1 // pred_region
      _
    $region57: #{tpu_custom_call.1} parent=1 // pred_fallthru
      _
    // Predicated region
    $region58: #{tpu_custom_call.1} parent=1 // pred_check
      _
    $region59: #{tpu_custom_call.1} parent=1 // pred_check_branch
      %118 = sbr.rel (0) target = $region61
    $region60: #{tpu_custom_call.1} parent=1 // pred_region
      %s120 = ssub.s32 16, 16
      %121 = vsyncadd [#allocation15], %s120
      %s123 = sshll.u32 [#allocation14], 4
      %s124 = int_to_ptr.vmem [resolvable:$true] %s123
      %126 = dma.hbm_to_vmem [thread:$0]  %s14, 16, %s124, [#allocation15]
    $region61: #{tpu_custom_call.1} parent=1 // pred_fallthru
      _
    // Predicated region
    $region62: #{tpu_custom_call.1} parent=1 // pred_check
      _
    $region63: #{tpu_custom_call.1} parent=1 // pred_check_branch
      %128 = sbr.rel (0) target = $region65
    $region64: #{tpu_custom_call.1} parent=1 // pred_region
      _
    $region65: #{tpu_custom_call.1} parent=1 // pred_fallthru
      _
    // Predicated region
    $region66: #{tpu_custom_call.1} parent=1 // pred_check
      _
    $region67: #{tpu_custom_call.1} parent=1 // pred_check_branch
      %130 = sbr.rel (0) target = $region69
    $region68: #{tpu_custom_call.1} parent=1 // pred_region
      _
    $region69: #{tpu_custom_call.1} parent=1 // pred_fallthru
      _
    // Predicated region
    $region70: #{tpu_custom_call.1} parent=1 // pred_check
      _
    $region71: #{tpu_custom_call.1} parent=1 // pred_check_branch
      %132 = sbr.rel (0) target = $region73
    $region72: #{tpu_custom_call.1} parent=1 // pred_region
      _
    $region73: #{tpu_custom_call.1} parent=1 // pred_fallthru
      _
    // Predicated region
    $region74: #{tpu_custom_call.1} parent=1 // pred_check
      _
    $region75: #{tpu_custom_call.1} parent=1 // pred_check_branch
      %134 = sbr.rel (0) target = $region77
    $region76: #{tpu_custom_call.1} parent=1 // pred_region
      _
    $region77: #{tpu_custom_call.1} parent=1 // pred_fallthru
      _
    // Predicated region
    $region78: #{tpu_custom_call.1} parent=1 // pred_check
      _
    $region79: #{tpu_custom_call.1} parent=1 // pred_check_branch
      %136 = sbr.rel (0) target = $region81
    $region80: #{tpu_custom_call.1} parent=1 // pred_region
      %137 = dma.done [#allocation3], 16
    $region81: #{tpu_custom_call.1} parent=1 // pred_fallthru
      _
    // Predicated region
    $region82: #{tpu_custom_call.1} parent=1 // pred_check
      _
    $region83: #{tpu_custom_call.1} parent=1 // pred_check_branch
      %139 = sbr.rel (0) target = $region85
    $region84: #{tpu_custom_call.1} parent=1 // pred_region
      %140 = dma.done [#allocation6], 64
    $region85: #{tpu_custom_call.1} parent=1 // pred_fallthru
      _
    // Predicated region
    $region86: #{tpu_custom_call.1} parent=1 // pred_check
      _
    $region87: #{tpu_custom_call.1} parent=1 // pred_check_branch
      %142 = sbr.rel (0) target = $region89
    $region88: #{tpu_custom_call.1} parent=1 // pred_region
      %143 = dma.done [#allocation6], 16
    $region89: #{tpu_custom_call.1} parent=1 // pred_fallthru
      _
    // Predicated region
    $region90: #{tpu_custom_call.1} parent=1 // pred_check
      _
    $region91: #{tpu_custom_call.1} parent=1 // pred_check_branch
      %145 = sbr.rel (0) target = $region93
    $region92: #{tpu_custom_call.1} parent=1 // pred_region
      %146 = dma.done [#allocation9], 64
    $region93: #{tpu_custom_call.1} parent=1 // pred_fallthru
      _
    // Predicated region
    $region94: #{tpu_custom_call.1} parent=1 // pred_check
      _
    $region95: #{tpu_custom_call.1} parent=1 // pred_check_branch
      %148 = sbr.rel (0) target = $region97
    $region96: #{tpu_custom_call.1} parent=1 // pred_region
      %149 = dma.done [#allocation9], 16
    $region97: #{tpu_custom_call.1} parent=1 // pred_fallthru
      _
    // Predicated region
    $region98: #{tpu_custom_call.1} parent=1 // pred_check
      _
    $region99: #{tpu_custom_call.1} parent=1 // pred_check_branch
      %151 = sbr.rel (0) target = $region101
    $region100: #{tpu_custom_call.1} parent=1 // pred_region
      %152 = dma.done [#allocation12], 16
    $region101: #{tpu_custom_call.1} parent=1 // pred_fallthru
      _
    // Predicated region
    $region102: #{tpu_custom_call.1} parent=1 // pred_check
      _
    $region103: #{tpu_custom_call.1} parent=1 // pred_check_branch
      %154 = sbr.rel (0) target = $region105
    $region104: #{tpu_custom_call.1} parent=1 // pred_region
      %155 = dma.done [#allocation12], 16
    $region105: #{tpu_custom_call.1} parent=1 // pred_fallthru
      _
    // Predicated region
    $region106: #{tpu_custom_call.1} parent=1 // pred_check
      _
    $region107: #{tpu_custom_call.1} parent=1 // pred_check_branch
      %157 = sbr.rel (0) target = $region109
    $region108: #{tpu_custom_call.1} parent=1 // pred_region
      %158 = dma.done [#allocation15], 16
    $region109: #{tpu_custom_call.1} parent=1 // pred_fallthru
      _
    %v160 = vld [vmem:[%s2] sm:$0xf]
    %v161 = vld [vmem:[%s2 + $0x4] sm:$0xf]
    %v162 = vld [vmem:[%s2 + $0x8] sm:$0xf]
    %v163 = vld [vmem:[%s2 + $0xc] sm:$0xf]
    %v164 = vld [vmem:[%s9] sm:$0xf]
    %v165 = vld [vmem:[%s9 + $0x4] sm:$0xf]
    %v166 = vld [vmem:[%s9 + $0x8] sm:$0xf]
    %v167 = vld [vmem:[%s9 + $0xc] sm:$0xf]
    %v168 = vld [vmem:[%s0] sm:$0xf]
    %v169 = vld [vmem:[%s0 + $0x4] sm:$0xf]
    %v170 = vld [vmem:[%s0 + $0x8] sm:$0xf]
    %v171 = vld [vmem:[%s0 + $0xc] sm:$0xf]
    %v172 = vld [vmem:[#allocation5] sm:$0xf]
    %v173 = vld [vmem:[#allocation7] sm:$0x1]
    %v175 = vlaneseq
    %v176 = vshrl.u32 %v175, 7
    %v177 = vsub.s32 0, %v176
    %v178 = vrot.slane %v173, %v177
    %v184 = vunpack.c.l.b16 %v168
    %v185 = vunpack.c.l.b16 %v169
    %v186 = vunpack.c.l.b16 %v170
    %v187 = vunpack.c.l.b16 %v171
    %v188 = vpack.c.b16 %v185, %v184
    %v189 = vpack.c.b16 %v187, %v186
    %vm190 = vcmask 64512
    %v192 = vsel %vm190, %v188, 0
    %v195 = vsel %vm190, %v189, 0
    %vm197 = vcmask 1043456
    %v199 = vsel %vm197, %v172, 0
    %201 = vmatprep.subr.bf16.mxu0 0
    %202 = vmatpush1.bf16.msra.mxu0 %v199
    %203 = vmatprep.subr.bf16.mxu0 0
    %204 = vmatpush1.bf16.msra.mxu0 0
    %205 = vmatprep.subr.bf16.mxu0 0
    %206 = vmatpush1.bf16.msra.mxu0 0
    %207 = vmatprep.subr.bf16.mxu0 0
    %208 = vmatpush1.bf16.msra.mxu0 0
    %209 = vmatprep.subr.bf16.mxu0 0
    %210 = vmatpush1.bf16.msra.mxu0 0
    %211 = vmatprep.subr.bf16.mxu0 0
    %212 = vmatpush1.bf16.msra.mxu0 0
    %213 = vmatprep.subr.bf16.mxu0 0
    %214 = vmatpush1.bf16.msra.mxu0 0
    %215 = vmatprep.subr.bf16.mxu0 0
    %216 = vmatpush1.bf16.msra.mxu0 0
    %217 = vmatprep.subr.bf16.mxu0 0
    %218 = vmatpush1.bf16.msra.mxu0 0
    %219 = vmatprep.subr.bf16.mxu0 0
    %220 = vmatpush1.bf16.msra.mxu0 0
    %221 = vmatprep.subr.bf16.mxu0 0
    %222 = vmatpush1.bf16.msra.mxu0 0
    %223 = vmatprep.subr.bf16.mxu0 0
    %224 = vmatpush1.bf16.msra.mxu0 0
    %225 = vmatprep.subr.bf16.mxu0 0
    %226 = vmatpush1.bf16.msra.mxu0 0
    %227 = vmatprep.subr.bf16.mxu0 0
    %228 = vmatpush1.bf16.msra.mxu0 0
    %229 = vmatprep.subr.bf16.mxu0 0
    %230 = vmatpush1.bf16.msra.mxu0 0
    %231 = vmatprep.subr.bf16.mxu0 0
    %232 = vmatpush1.bf16.msra.mxu0 0
    %233 = vmatprep.mubr.bf16.mxu0 0
    %234 = vmatmul.mubr.bf16.gmra.mrb[0].mxu0 %v192
    %v235 = vpop.f32.mrb[0].mxu0
    %v236 = vadd.f32 %v178, %v235
    %v237 = vpop.f32.mrb[0].mxu0
    %v238 = vpop.f32.mrb[0].mxu0
    %v239 = vadd.f32 %v178, %v238
    %v240 = vpop.f32.mrb[0].mxu0
    %241 = vmatprep.mubr.bf16.mxu0 0
    %242 = vmatmul.mubr.bf16.gmra.mrb[0].mxu0 %v195
    %v243 = vpop.f32.mrb[0].mxu0
    %v244 = vadd.f32 %v178, %v243
    %v245 = vpop.f32.mrb[0].mxu0
    %v246 = vpop.f32.mrb[0].mxu0
    %v247 = vadd.f32 %v178, %v246
    %v248 = vpop.f32.mrb[0].mxu0
    %249 = vdwg.mxu0
    %v250 = vld [vmem:[%s3] sm:$0xf]
    %v251 = vld [vmem:[%s3 + $0x4] sm:$0xf]
    %v252 = vld [vmem:[%s3 + $0x8] sm:$0xf]
    %v253 = vld [vmem:[%s3 + $0xc] sm:$0xf]
    %v254 = vld [vmem:[%s1] sm:$0xf]
    %v255 = vld [vmem:[%s1 + $0x4] sm:$0xf]
    %v256 = vld [vmem:[%s1 + $0x8] sm:$0xf]
    %v257 = vld [vmem:[%s1 + $0xc] sm:$0xf]
    %v258 = vld [vmem:[%s1 + $0x10] sm:$0xf]
    %v259 = vld [vmem:[%s1 + $0x14] sm:$0xf]
    %v260 = vld [vmem:[%s1 + $0x18] sm:$0xf]
    %v261 = vld [vmem:[%s1 + $0x1c] sm:$0xf]
    %v266 = vunpack.c.l.b16 %v250
    %v267 = vunpack.c.l.b16 %v251
    %v268 = vunpack.c.l.b16 %v252
    %v269 = vunpack.c.l.b16 %v253
    %v270 = vpack.c.b16 %v267, %v266
    %v271 = vpack.c.b16 %v269, %v268
    %v280 = vunpack.c.l.b16 %v254
    %v281 = vunpack.c.l.b16 %v255
    %v282 = vunpack.c.l.b16 %v256
    %v283 = vunpack.c.l.b16 %v257
    %v284 = vunpack.c.l.b16 %v258
    %v285 = vunpack.c.l.b16 %v259
    %v286 = vunpack.c.l.b16 %v260
    %v287 = vunpack.c.l.b16 %v261
    %v288 = vpack.c.b16 %v281, %v280
    %v289 = vpack.c.b16 %v283, %v282
    %v290 = vpack.c.b16 %v285, %v284
    %v291 = vpack.c.b16 %v287, %v286
    %vm296 = vcmask 523264
    %v298 = vsel %vm296, %v270, 0
    %v301 = vsel %vm296, %v271, 0
    %303 = vmatprep.subr.bf16.mxu0 0
    %304 = vmatpush1.bf16.msra.mxu0 %v288
    %305 = vmatprep.subr.bf16.mxu0 0
    %306 = vmatpush1.bf16.msra.mxu0 %v289
    %307 = vmatprep.subr.bf16.mxu0 0
    %308 = vmatpush1.bf16.msra.mxu0 %v290
    %309 = vmatprep.subr.bf16.mxu0 0
    %310 = vmatpush1.bf16.msra.mxu0 %v291
    %311 = vmatprep.subr.bf16.mxu0 0
    %312 = vmatpush1.bf16.msra.mxu0 0
    %313 = vmatprep.subr.bf16.mxu0 0
    %314 = vmatpush1.bf16.msra.mxu0 0
    %315 = vmatprep.subr.bf16.mxu0 0
    %316 = vmatpush1.bf16.msra.mxu0 0
    %317 = vmatprep.subr.bf16.mxu0 0
    %318 = vmatpush1.bf16.msra.mxu0 0
    %319 = vmatprep.subr.bf16.mxu0 0
    %320 = vmatpush1.bf16.msra.mxu0 0
    %321 = vmatprep.subr.bf16.mxu0 0
    %322 = vmatpush1.bf16.msra.mxu0 0
    %323 = vmatprep.subr.bf16.mxu0 0
    %324 = vmatpush1.bf16.msra.mxu0 0
    %325 = vmatprep.subr.bf16.mxu0 0
    %326 = vmatpush1.bf16.msra.mxu0 0
    %327 = vmatprep.subr.bf16.mxu0 0
    %328 = vmatpush1.bf16.msra.mxu0 0
    %329 = vmatprep.subr.bf16.mxu0 0
    %330 = vmatpush1.bf16.msra.mxu0 0
    %331 = vmatprep.subr.bf16.mxu0 0
    %332 = vmatpush1.bf16.msra.mxu0 0
    %333 = vmatprep.subr.bf16.mxu0 0
    %334 = vmatpush1.bf16.msra.mxu0 0
    %335 = vmatprep.mubr.bf16.mxu0 0
    %336 = vmatmul.mubr.bf16.gmra.mrb[0].mxu0 %v298
    %v337 = vpop.f32.mrb[0].mxu0
    %v338 = vadd.f32 0.0, %v337
    %v339 = vpop.f32.mrb[0].mxu0
    %v340 = vpop.f32.mrb[0].mxu0
    %v341 = vadd.f32 0.0, %v340
    %v342 = vpop.f32.mrb[0].mxu0
    %343 = vmatprep.mubr.bf16.mxu0 0
    %344 = vmatmul.mubr.bf16.gmra.mrb[0].mxu0 %v301
    %v345 = vpop.f32.mrb[0].mxu0
    %v346 = vadd.f32 0.0, %v345
    %v347 = vpop.f32.mrb[0].mxu0
    %v348 = vpop.f32.mrb[0].mxu0
    %v349 = vadd.f32 0.0, %v348
    %v350 = vpop.f32.mrb[0].mxu0
    %351 = vdwg.mxu0
    %v352 = vunpack.c.l.bf16 %v250
    %v353 = vunpack.c.l.bf16 %v251
    %v354 = vunpack.c.l.bf16 %v252
    %v355 = vunpack.c.l.bf16 %v253
    %v356 = vsel %vm296, %v352, 0.0
    %357 = vadd.xlane.f32.xlu0 %v356
    %v358 = vpop.xlane.xlu0 %357
    %v359 = vsel %vm296, %v353, 0.0
    %360 = vadd.xlane.f32.xlu0 %v359
    %v361 = vpop.xlane.xlu0 %360
    %v362 = vsel %vm296, %v354, 0.0
    %363 = vadd.xlane.f32.xlu0 %v362
    %v364 = vpop.xlane.xlu0 %363
    %v365 = vsel %vm296, %v355, 0.0
    %366 = vadd.xlane.f32.xlu0 %v365
    %v367 = vpop.xlane.xlu0 %366
    %v368 = vpack.c.bf16 %v341, %v338
    %v369 = vpack.c.bf16 %v349, %v346
    %v370 = vld [vmem:[#allocation8] sm:$0xf]
    %v371 = vld [vmem:[#allocation10] sm:$0x1]
    %v373 = vlaneseq
    %v374 = vshrl.u32 %v373, 7
    %v375 = vsub.s32 0, %v374
    %v376 = vrot.slane %v371, %v375
    %v378 = vmul.f32 %v358, %v376
    %v379 = vmul.f32 %v361, %v376
    %v380 = vmul.f32 %v364, %v376
    %v381 = vmul.f32 %v367, %v376
    %v383 = vsel %vm190, %v368, 0
    %v386 = vsel %vm190, %v369, 0
    %v389 = vsel %vm197, %v370, 0
    %391 = vmatprep.subr.bf16.mxu0 0
    %392 = vmatpush1.bf16.msra.mxu0 %v389
    %393 = vmatprep.subr.bf16.mxu0 0
    %394 = vmatpush1.bf16.msra.mxu0 0
    %395 = vmatprep.subr.bf16.mxu0 0
    %396 = vmatpush1.bf16.msra.mxu0 0
    %397 = vmatprep.subr.bf16.mxu0 0
    %398 = vmatpush1.bf16.msra.mxu0 0
    %399 = vmatprep.subr.bf16.mxu0 0
    %400 = vmatpush1.bf16.msra.mxu0 0
    %401 = vmatprep.subr.bf16.mxu0 0
    %402 = vmatpush1.bf16.msra.mxu0 0
    %403 = vmatprep.subr.bf16.mxu0 0
    %404 = vmatpush1.bf16.msra.mxu0 0
    %405 = vmatprep.subr.bf16.mxu0 0
    %406 = vmatpush1.bf16.msra.mxu0 0
    %407 = vmatprep.subr.bf16.mxu0 0
    %408 = vmatpush1.bf16.msra.mxu0 0
    %409 = vmatprep.subr.bf16.mxu0 0
    %410 = vmatpush1.bf16.msra.mxu0 0
    %411 = vmatprep.subr.bf16.mxu0 0
    %412 = vmatpush1.bf16.msra.mxu0 0
    %413 = vmatprep.subr.bf16.mxu0 0
    %414 = vmatpush1.bf16.msra.mxu0 0
    %415 = vmatprep.subr.bf16.mxu0 0
    %416 = vmatpush1.bf16.msra.mxu0 0
    %417 = vmatprep.subr.bf16.mxu0 0
    %418 = vmatpush1.bf16.msra.mxu0 0
    %419 = vmatprep.subr.bf16.mxu0 0
    %420 = vmatpush1.bf16.msra.mxu0 0
    %421 = vmatprep.subr.bf16.mxu0 0
    %422 = vmatpush1.bf16.msra.mxu0 0
    %423 = vmatprep.mubr.bf16.mxu0 0
    %424 = vmatmul.mubr.bf16.gmra.mrb[0].mxu0 %v383
    %v425 = vpop.f32.mrb[0].mxu0
    %v426 = vadd.f32 %v378, %v425
    %v427 = vpop.f32.mrb[0].mxu0
    %v428 = vpop.f32.mrb[0].mxu0
    %v429 = vadd.f32 %v379, %v428
    %v430 = vpop.f32.mrb[0].mxu0
    %431 = vmatprep.mubr.bf16.mxu0 0
    %432 = vmatmul.mubr.bf16.gmra.mrb[0].mxu0 %v386
    %v433 = vpop.f32.mrb[0].mxu0
    %v434 = vadd.f32 %v380, %v433
    %v435 = vpop.f32.mrb[0].mxu0
    %v436 = vpop.f32.mrb[0].mxu0
    %v437 = vadd.f32 %v381, %v436
    %v438 = vpop.f32.mrb[0].mxu0
    %439 = vdwg.mxu0
    %v440 = vadd.f32 %v236, %v426
    %v441 = vadd.f32 %v239, %v429
    %v442 = vadd.f32 %v244, %v434
    %v443 = vadd.f32 %v247, %v437
    %v444 = vmax.f32 %v440, 0.0
    %v445 = vmax.f32 %v441, 0.0
    %v446 = vmax.f32 %v442, 0.0
    %v447 = vmax.f32 %v443, 0.0
    %v448 = vld [vmem:[#allocation11] sm:$0x1]
    %v450 = vlaneseq
    %v451 = vshrl.u32 %v450, 7
    %v452 = vsub.s32 0, %v451
    %v453 = vrot.slane %v448, %v452
    %v455 = vadd.f32 %v440, %v453
    %v456 = vadd.f32 %v441, %v453
    %v457 = vadd.f32 %v442, %v453
    %v458 = vadd.f32 %v443, %v453
    %v459 = vpack.c.bf16 %v445, %v444
    %v460 = vpack.c.bf16 %v447, %v446
    %v465 = vunpack.c.l.b16 %v160
    %v466 = vunpack.c.l.b16 %v161
    %v467 = vunpack.c.l.b16 %v162
    %v468 = vunpack.c.l.b16 %v163
    %v469 = vpack.c.b16 %v466, %v465
    %v470 = vpack.c.b16 %v468, %v467
    %vm471 = vcmask 261120
    %v473 = vsel %vm471, %v469, 0
    %v476 = vsel %vm471, %v470, 0
    %478 = vmatprep.subr.bf16.mxu0 0
    %479 = vmatpush1.bf16.msra.mxu0 %v459
    %480 = vmatprep.subr.bf16.mxu0 0
    %481 = vmatpush1.bf16.msra.mxu0 %v460
    %482 = vmatprep.subr.bf16.mxu0 0
    %483 = vmatpush1.bf16.msra.mxu0 0
    %484 = vmatprep.subr.bf16.mxu0 0
    %485 = vmatpush1.bf16.msra.mxu0 0
    %486 = vmatprep.subr.bf16.mxu0 0
    %487 = vmatpush1.bf16.msra.mxu0 0
    %488 = vmatprep.subr.bf16.mxu0 0
    %489 = vmatpush1.bf16.msra.mxu0 0
    %490 = vmatprep.subr.bf16.mxu0 0
    %491 = vmatpush1.bf16.msra.mxu0 0
    %492 = vmatprep.subr.bf16.mxu0 0
    %493 = vmatpush1.bf16.msra.mxu0 0
    %494 = vmatprep.subr.bf16.mxu0 0
    %495 = vmatpush1.bf16.msra.mxu0 0
    %496 = vmatprep.subr.bf16.mxu0 0
    %497 = vmatpush1.bf16.msra.mxu0 0
    %498 = vmatprep.subr.bf16.mxu0 0
    %499 = vmatpush1.bf16.msra.mxu0 0
    %500 = vmatprep.subr.bf16.mxu0 0
    %501 = vmatpush1.bf16.msra.mxu0 0
    %502 = vmatprep.subr.bf16.mxu0 0
    %503 = vmatpush1.bf16.msra.mxu0 0
    %504 = vmatprep.subr.bf16.mxu0 0
    %505 = vmatpush1.bf16.msra.mxu0 0
    %506 = vmatprep.subr.bf16.mxu0 0
    %507 = vmatpush1.bf16.msra.mxu0 0
    %508 = vmatprep.subr.bf16.mxu0 0
    %509 = vmatpush1.bf16.msra.mxu0 0
    %510 = vmatprep.mubr.bf16.mxu0 0
    %511 = vmatmul.mubr.bf16.gmra.mrb[0].mxu0 %v473
    %v512 = vpop.f32.mrb[0].mxu0
    %v513 = vadd.f32 0.0, %v512
    %v514 = vpop.f32.mrb[0].mxu0
    %v515 = vpop.f32.mrb[0].mxu0
    %v516 = vadd.f32 0.0, %v515
    %v517 = vpop.f32.mrb[0].mxu0
    %518 = vmatprep.mubr.bf16.mxu0 0
    %519 = vmatmul.mubr.bf16.gmra.mrb[0].mxu0 %v476
    %v520 = vpop.f32.mrb[0].mxu0
    %v521 = vadd.f32 0.0, %v520
    %v522 = vpop.f32.mrb[0].mxu0
    %v523 = vpop.f32.mrb[0].mxu0
    %v524 = vadd.f32 0.0, %v523
    %v525 = vpop.f32.mrb[0].mxu0
    %526 = vdwg.mxu0
    %v527 = vpack.c.bf16 %v516, %v513
    %v528 = vpack.c.bf16 %v524, %v521
    %v533 = vunpack.c.l.b16 %v164
    %v534 = vunpack.c.l.b16 %v165
    %v535 = vunpack.c.l.b16 %v166
    %v536 = vunpack.c.l.b16 %v167
    %v537 = vpack.c.b16 %v534, %v533
    %v538 = vpack.c.b16 %v536, %v535
    %v542 = vsel %vm471, %v527, 0
    %v545 = vsel %vm471, %v528, 0
    %547 = vmatprep.subr.bf16.mxu0 0
    %548 = vmatpush1.bf16.msra.mxu0 %v537
    %549 = vmatprep.subr.bf16.mxu0 0
    %550 = vmatpush1.bf16.msra.mxu0 %v538
    %551 = vmatprep.subr.bf16.mxu0 0
    %552 = vmatpush1.bf16.msra.mxu0 0
    %553 = vmatprep.subr.bf16.mxu0 0
    %554 = vmatpush1.bf16.msra.mxu0 0
    %555 = vmatprep.subr.bf16.mxu0 0
    %556 = vmatpush1.bf16.msra.mxu0 0
    %557 = vmatprep.subr.bf16.mxu0 0
    %558 = vmatpush1.bf16.msra.mxu0 0
    %559 = vmatprep.subr.bf16.mxu0 0
    %560 = vmatpush1.bf16.msra.mxu0 0
    %561 = vmatprep.subr.bf16.mxu0 0
    %562 = vmatpush1.bf16.msra.mxu0 0
    %563 = vmatprep.subr.bf16.mxu0 0
    %564 = vmatpush1.bf16.msra.mxu0 0
    %565 = vmatprep.subr.bf16.mxu0 0
    %566 = vmatpush1.bf16.msra.mxu0 0
    %567 = vmatprep.subr.bf16.mxu0 0
    %568 = vmatpush1.bf16.msra.mxu0 0
    %569 = vmatprep.subr.bf16.mxu0 0
    %570 = vmatpush1.bf16.msra.mxu0 0
    %571 = vmatprep.subr.bf16.mxu0 0
    %572 = vmatpush1.bf16.msra.mxu0 0
    %573 = vmatprep.subr.bf16.mxu0 0
    %574 = vmatpush1.bf16.msra.mxu0 0
    %575 = vmatprep.subr.bf16.mxu0 0
    %576 = vmatpush1.bf16.msra.mxu0 0
    %577 = vmatprep.subr.bf16.mxu0 0
    %578 = vmatpush1.bf16.msra.mxu0 0
    %579 = vmatprep.mubr.bf16.mxu0 0
    %580 = vmatmul.mubr.bf16.gmra.mrb[0].mxu0 %v542
    %v581 = vpop.f32.mrb[0].mxu0
    %v582 = vadd.f32 %v455, %v581
    %v583 = vpop.f32.mrb[0].mxu0
    %v584 = vpop.f32.mrb[0].mxu0
    %v585 = vadd.f32 %v456, %v584
    %v586 = vpop.f32.mrb[0].mxu0
    %587 = vmatprep.mubr.bf16.mxu0 0
    %588 = vmatmul.mubr.bf16.gmra.mrb[0].mxu0 %v545
    %v589 = vpop.f32.mrb[0].mxu0
    %v590 = vadd.f32 %v457, %v589
    %v591 = vpop.f32.mrb[0].mxu0
    %v592 = vpop.f32.mrb[0].mxu0
    %v593 = vadd.f32 %v458, %v592
    %v594 = vpop.f32.mrb[0].mxu0
    %595 = vdwg.mxu0
    %v596 = vmax.f32 %v582, 0.0
    %v597 = vmax.f32 %v585, 0.0
    %v598 = vmax.f32 %v590, 0.0
    %v599 = vmax.f32 %v593, 0.0
    %v600 = vpack.c.bf16 %v597, %v596
    %v601 = vpack.c.bf16 %v599, %v598
    %602 = vmatprep.subr.bf16.mxu0 0
    %603 = vmatpush1.bf16.msra.mxu0 %v600
    %604 = vmatprep.subr.bf16.mxu0 0
    %605 = vmatpush1.bf16.msra.mxu0 %v601
    %606 = vmatprep.subr.bf16.mxu0 0
    %607 = vmatpush1.bf16.msra.mxu0 0
    %608 = vmatprep.subr.bf16.mxu0 0
    %609 = vmatpush1.bf16.msra.mxu0 0
    %610 = vmatprep.subr.bf16.mxu0 0
    %611 = vmatpush1.bf16.msra.mxu0 0
    %612 = vmatprep.subr.bf16.mxu0 0
    %613 = vmatpush1.bf16.msra.mxu0 0
    %614 = vmatprep.subr.bf16.mxu0 0
    %615 = vmatpush1.bf16.msra.mxu0 0
    %616 = vmatprep.subr.bf16.mxu0 0
    %617 = vmatpush1.bf16.msra.mxu0 0
    %618 = vmatprep.subr.bf16.mxu0 0
    %619 = vmatpush1.bf16.msra.mxu0 0
    %620 = vmatprep.subr.bf16.mxu0 0
    %621 = vmatpush1.bf16.msra.mxu0 0
    %622 = vmatprep.subr.bf16.mxu0 0
    %623 = vmatpush1.bf16.msra.mxu0 0
    %624 = vmatprep.subr.bf16.mxu0 0
    %625 = vmatpush1.bf16.msra.mxu0 0
    %626 = vmatprep.subr.bf16.mxu0 0
    %627 = vmatpush1.bf16.msra.mxu0 0
    %628 = vmatprep.subr.bf16.mxu0 0
    %629 = vmatpush1.bf16.msra.mxu0 0
    %630 = vmatprep.subr.bf16.mxu0 0
    %631 = vmatpush1.bf16.msra.mxu0 0
    %632 = vmatprep.subr.bf16.mxu0 0
    %633 = vmatpush1.bf16.msra.mxu0 0
    %634 = vmatprep.mubr.bf16.mxu0 0
    %635 = vmatmul.mubr.bf16.gmra.mrb[0].mxu0 %v473
    %v636 = vpop.f32.mrb[0].mxu0
    %v637 = vadd.f32 0.0, %v636
    %v638 = vpop.f32.mrb[0].mxu0
    %v639 = vpop.f32.mrb[0].mxu0
    %v640 = vadd.f32 0.0, %v639
    %v641 = vpop.f32.mrb[0].mxu0
    %642 = vmatprep.mubr.bf16.mxu0 0
    %643 = vmatmul.mubr.bf16.gmra.mrb[0].mxu0 %v476
    %v644 = vpop.f32.mrb[0].mxu0
    %v645 = vadd.f32 0.0, %v644
    %v646 = vpop.f32.mrb[0].mxu0
    %v647 = vpop.f32.mrb[0].mxu0
    %v648 = vadd.f32 0.0, %v647
    %v649 = vpop.f32.mrb[0].mxu0
    %650 = vdwg.mxu0
    %v651 = vpack.c.bf16 %v640, %v637
    %v652 = vpack.c.bf16 %v648, %v645
    %v654 = vsel %vm471, %v651, 0
    %v657 = vsel %vm471, %v652, 0
    %659 = vmatprep.subr.bf16.mxu0 0
    %660 = vmatpush1.bf16.msra.mxu0 %v537
    %661 = vmatprep.subr.bf16.mxu0 0
    %662 = vmatpush1.bf16.msra.mxu0 %v538
    %663 = vmatprep.subr.bf16.mxu0 0
    %664 = vmatpush1.bf16.msra.mxu0 0
    %665 = vmatprep.subr.bf16.mxu0 0
    %666 = vmatpush1.bf16.msra.mxu0 0
    %667 = vmatprep.subr.bf16.mxu0 0
    %668 = vmatpush1.bf16.msra.mxu0 0
    %669 = vmatprep.subr.bf16.mxu0 0
    %670 = vmatpush1.bf16.msra.mxu0 0
    %671 = vmatprep.subr.bf16.mxu0 0
    %672 = vmatpush1.bf16.msra.mxu0 0
    %673 = vmatprep.subr.bf16.mxu0 0
    %674 = vmatpush1.bf16.msra.mxu0 0
    %675 = vmatprep.subr.bf16.mxu0 0
    %676 = vmatpush1.bf16.msra.mxu0 0
    %677 = vmatprep.subr.bf16.mxu0 0
    %678 = vmatpush1.bf16.msra.mxu0 0
    %679 = vmatprep.subr.bf16.mxu0 0
    %680 = vmatpush1.bf16.msra.mxu0 0
    %681 = vmatprep.subr.bf16.mxu0 0
    %682 = vmatpush1.bf16.msra.mxu0 0
    %683 = vmatprep.subr.bf16.mxu0 0
    %684 = vmatpush1.bf16.msra.mxu0 0
    %685 = vmatprep.subr.bf16.mxu0 0
    %686 = vmatpush1.bf16.msra.mxu0 0
    %687 = vmatprep.subr.bf16.mxu0 0
    %688 = vmatpush1.bf16.msra.mxu0 0
    %689 = vmatprep.subr.bf16.mxu0 0
    %690 = vmatpush1.bf16.msra.mxu0 0
    %691 = vmatprep.mubr.bf16.mxu0 0
    %692 = vmatmul.mubr.bf16.gmra.mrb[0].mxu0 %v654
    %v693 = vpop.f32.mrb[0].mxu0
    %v694 = vadd.f32 %v455, %v693
    %v695 = vpop.f32.mrb[0].mxu0
    %v696 = vpop.f32.mrb[0].mxu0
    %v697 = vadd.f32 %v456, %v696
    %v698 = vpop.f32.mrb[0].mxu0
    %699 = vmatprep.mubr.bf16.mxu0 0
    %700 = vmatmul.mubr.bf16.gmra.mrb[0].mxu0 %v657
    %v701 = vpop.f32.mrb[0].mxu0
    %v702 = vadd.f32 %v457, %v701
    %v703 = vpop.f32.mrb[0].mxu0
    %v704 = vpop.f32.mrb[0].mxu0
    %v705 = vadd.f32 %v458, %v704
    %v706 = vpop.f32.mrb[0].mxu0
    %707 = vdwg.mxu0
    %v708 = vmax.f32 %v694, 0.0
    %v709 = vmax.f32 %v697, 0.0
    %v710 = vmax.f32 %v702, 0.0
    %v711 = vmax.f32 %v705, 0.0
    %v712 = vpack.c.bf16 %v709, %v708
    %v713 = vpack.c.bf16 %v711, %v710
    %714 = vmatprep.subr.bf16.mxu0 0
    %715 = vmatpush1.bf16.msra.mxu0 %v712
    %716 = vmatprep.subr.bf16.mxu0 0
    %717 = vmatpush1.bf16.msra.mxu0 %v713
    %718 = vmatprep.subr.bf16.mxu0 0
    %719 = vmatpush1.bf16.msra.mxu0 0
    %720 = vmatprep.subr.bf16.mxu0 0
    %721 = vmatpush1.bf16.msra.mxu0 0
    %722 = vmatprep.subr.bf16.mxu0 0
    %723 = vmatpush1.bf16.msra.mxu0 0
    %724 = vmatprep.subr.bf16.mxu0 0
    %725 = vmatpush1.bf16.msra.mxu0 0
    %726 = vmatprep.subr.bf16.mxu0 0
    %727 = vmatpush1.bf16.msra.mxu0 0
    %728 = vmatprep.subr.bf16.mxu0 0
    %729 = vmatpush1.bf16.msra.mxu0 0
    %730 = vmatprep.subr.bf16.mxu0 0
    %731 = vmatpush1.bf16.msra.mxu0 0
    %732 = vmatprep.subr.bf16.mxu0 0
    %733 = vmatpush1.bf16.msra.mxu0 0
    %734 = vmatprep.subr.bf16.mxu0 0
    %735 = vmatpush1.bf16.msra.mxu0 0
    %736 = vmatprep.subr.bf16.mxu0 0
    %737 = vmatpush1.bf16.msra.mxu0 0
    %738 = vmatprep.subr.bf16.mxu0 0
    %739 = vmatpush1.bf16.msra.mxu0 0
    %740 = vmatprep.subr.bf16.mxu0 0
    %741 = vmatpush1.bf16.msra.mxu0 0
    %742 = vmatprep.subr.bf16.mxu0 0
    %743 = vmatpush1.bf16.msra.mxu0 0
    %744 = vmatprep.subr.bf16.mxu0 0
    %745 = vmatpush1.bf16.msra.mxu0 0
    %746 = vmatprep.mubr.bf16.mxu0 0
    %747 = vmatmul.mubr.bf16.gmra.mrb[0].mxu0 %v473
    %v748 = vpop.f32.mrb[0].mxu0
    %v749 = vadd.f32 0.0, %v748
    %v750 = vpop.f32.mrb[0].mxu0
    %v751 = vpop.f32.mrb[0].mxu0
    %v752 = vadd.f32 0.0, %v751
    %v753 = vpop.f32.mrb[0].mxu0
    %754 = vmatprep.mubr.bf16.mxu0 0
    %755 = vmatmul.mubr.bf16.gmra.mrb[0].mxu0 %v476
    %v756 = vpop.f32.mrb[0].mxu0
    %v757 = vadd.f32 0.0, %v756
    %v758 = vpop.f32.mrb[0].mxu0
    %v759 = vpop.f32.mrb[0].mxu0
    %v760 = vadd.f32 0.0, %v759
    %v761 = vpop.f32.mrb[0].mxu0
    %762 = vdwg.mxu0
    %v763 = vpack.c.bf16 %v752, %v749
    %v764 = vpack.c.bf16 %v760, %v757
    %v766 = vsel %vm471, %v763, 0
    %v769 = vsel %vm471, %v764, 0
    %771 = vmatprep.subr.bf16.mxu0 0
    %772 = vmatpush1.bf16.msra.mxu0 %v537
    %773 = vmatprep.subr.bf16.mxu0 0
    %774 = vmatpush1.bf16.msra.mxu0 %v538
    %775 = vmatprep.subr.bf16.mxu0 0
    %776 = vmatpush1.bf16.msra.mxu0 0
    %777 = vmatprep.subr.bf16.mxu0 0
    %778 = vmatpush1.bf16.msra.mxu0 0
    %779 = vmatprep.subr.bf16.mxu0 0
    %780 = vmatpush1.bf16.msra.mxu0 0
    %781 = vmatprep.subr.bf16.mxu0 0
    %782 = vmatpush1.bf16.msra.mxu0 0
    %783 = vmatprep.subr.bf16.mxu0 0
    %784 = vmatpush1.bf16.msra.mxu0 0
    %785 = vmatprep.subr.bf16.mxu0 0
    %786 = vmatpush1.bf16.msra.mxu0 0
    %787 = vmatprep.subr.bf16.mxu0 0
    %788 = vmatpush1.bf16.msra.mxu0 0
    %789 = vmatprep.subr.bf16.mxu0 0
    %790 = vmatpush1.bf16.msra.mxu0 0
    %791 = vmatprep.subr.bf16.mxu0 0
    %792 = vmatpush1.bf16.msra.mxu0 0
    %793 = vmatprep.subr.bf16.mxu0 0
    %794 = vmatpush1.bf16.msra.mxu0 0
    %795 = vmatprep.subr.bf16.mxu0 0
    %796 = vmatpush1.bf16.msra.mxu0 0
    %797 = vmatprep.subr.bf16.mxu0 0
    %798 = vmatpush1.bf16.msra.mxu0 0
    %799 = vmatprep.subr.bf16.mxu0 0
    %800 = vmatpush1.bf16.msra.mxu0 0
    %801 = vmatprep.subr.bf16.mxu0 0
    %802 = vmatpush1.bf16.msra.mxu0 0
    %803 = vmatprep.mubr.bf16.mxu0 0
    %804 = vmatmul.mubr.bf16.gmra.mrb[0].mxu0 %v766
    %v805 = vpop.f32.mrb[0].mxu0
    %v806 = vadd.f32 %v455, %v805
    %v807 = vpop.f32.mrb[0].mxu0
    %v808 = vpop.f32.mrb[0].mxu0
    %v809 = vadd.f32 %v456, %v808
    %v810 = vpop.f32.mrb[0].mxu0
    %811 = vmatprep.mubr.bf16.mxu0 0
    %812 = vmatmul.mubr.bf16.gmra.mrb[0].mxu0 %v769
    %v813 = vpop.f32.mrb[0].mxu0
    %v814 = vadd.f32 %v457, %v813
    %v815 = vpop.f32.mrb[0].mxu0
    %v816 = vpop.f32.mrb[0].mxu0
    %v817 = vadd.f32 %v458, %v816
    %v818 = vpop.f32.mrb[0].mxu0
    %819 = vdwg.mxu0
    %v820 = vmax.f32 %v806, 0.0
    %v821 = vmax.f32 %v809, 0.0
    %v822 = vmax.f32 %v814, 0.0
    %v823 = vmax.f32 %v817, 0.0
    %v824 = vld [vmem:[#allocation2] sm:$0x1]
    %v825 = vpack.c.bf16 %v821, %v820
    %v826 = vpack.c.bf16 %v823, %v822
    %v828 = vsel %vm471, %v824, 0
    %830 = vmatprep.subr.bf16.mxu0 0
    %831 = vmatpush1.bf16.msra.mxu0 %v825
    %832 = vmatprep.subr.bf16.mxu0 0
    %833 = vmatpush1.bf16.msra.mxu0 %v826
    %834 = vmatprep.subr.bf16.mxu0 0
    %835 = vmatpush1.bf16.msra.mxu0 0
    %836 = vmatprep.subr.bf16.mxu0 0
    %837 = vmatpush1.bf16.msra.mxu0 0
    %838 = vmatprep.subr.bf16.mxu0 0
    %839 = vmatpush1.bf16.msra.mxu0 0
    %840 = vmatprep.subr.bf16.mxu0 0
    %841 = vmatpush1.bf16.msra.mxu0 0
    %842 = vmatprep.subr.bf16.mxu0 0
    %843 = vmatpush1.bf16.msra.mxu0 0
    %844 = vmatprep.subr.bf16.mxu0 0
    %845 = vmatpush1.bf16.msra.mxu0 0
    %846 = vmatprep.subr.bf16.mxu0 0
    %847 = vmatpush1.bf16.msra.mxu0 0
    %848 = vmatprep.subr.bf16.mxu0 0
    %849 = vmatpush1.bf16.msra.mxu0 0
    %850 = vmatprep.subr.bf16.mxu0 0
    %851 = vmatpush1.bf16.msra.mxu0 0
    %852 = vmatprep.subr.bf16.mxu0 0
    %853 = vmatpush1.bf16.msra.mxu0 0
    %854 = vmatprep.subr.bf16.mxu0 0
    %855 = vmatpush1.bf16.msra.mxu0 0
    %856 = vmatprep.subr.bf16.mxu0 0
    %857 = vmatpush1.bf16.msra.mxu0 0
    %858 = vmatprep.subr.bf16.mxu0 0
    %859 = vmatpush1.bf16.msra.mxu0 0
    %860 = vmatprep.subr.bf16.mxu0 0
    %861 = vmatpush1.bf16.msra.mxu0 0
    %862 = vmatprep.mubr.bf16.mxu0 0
    %863 = vmatmul.mubr.bf16.gmra.mrb[0].mxu0 %v828
    %v864 = vpop.f32.mrb[0].mxu0
    %v865 = vadd.f32 0.0, %v864
    %v866 = vpop.f32.mrb[0].mxu0
    %v867 = vpop.f32.mrb[0].mxu0
    %v868 = vpop.f32.mrb[0].mxu0
    %869 = vdwg.mxu0
    %v870 = vpack.c.bf16 %v865, %v865
    %v871 = vld [vmem:[%s11] sm:$0xf]
    %v872 = vld [vmem:[%s11 + $0x4] sm:$0xf]
    %v873 = vld [vmem:[%s11 + $0x8] sm:$0xf]
    %v874 = vld [vmem:[%s11 + $0xc] sm:$0xf]
    %v875 = vld [vmem:[#allocation13] sm:$0x1]
    %v877 = vlaneseq
    %v878 = vshrl.u32 %v877, 7
    %v879 = vsub.s32 0, %v878
    %v880 = vrot.slane %v875, %v879
    %v886 = vunpack.c.l.b16 %v871
    %v887 = vunpack.c.l.b16 %v872
    %v888 = vunpack.c.l.b16 %v873
    %v889 = vunpack.c.l.b16 %v874
    %v890 = vpack.c.b16 %v887, %v886
    %v891 = vpack.c.b16 %v889, %v888
    %v895 = vsel %vm471, %v870, 0
    %897 = vmatprep.subr.bf16.mxu0 0
    %898 = vmatpush1.bf16.msra.mxu0 %v890
    %899 = vmatprep.subr.bf16.mxu0 0
    %900 = vmatpush1.bf16.msra.mxu0 %v891
    %901 = vmatprep.subr.bf16.mxu0 0
    %902 = vmatpush1.bf16.msra.mxu0 0
    %903 = vmatprep.subr.bf16.mxu0 0
    %904 = vmatpush1.bf16.msra.mxu0 0
    %905 = vmatprep.subr.bf16.mxu0 0
    %906 = vmatpush1.bf16.msra.mxu0 0
    %907 = vmatprep.subr.bf16.mxu0 0
    %908 = vmatpush1.bf16.msra.mxu0 0
    %909 = vmatprep.subr.bf16.mxu0 0
    %910 = vmatpush1.bf16.msra.mxu0 0
    %911 = vmatprep.subr.bf16.mxu0 0
    %912 = vmatpush1.bf16.msra.mxu0 0
    %913 = vmatprep.subr.bf16.mxu0 0
    %914 = vmatpush1.bf16.msra.mxu0 0
    %915 = vmatprep.subr.bf16.mxu0 0
    %916 = vmatpush1.bf16.msra.mxu0 0
    %917 = vmatprep.subr.bf16.mxu0 0
    %918 = vmatpush1.bf16.msra.mxu0 0
    %919 = vmatprep.subr.bf16.mxu0 0
    %920 = vmatpush1.bf16.msra.mxu0 0
    %921 = vmatprep.subr.bf16.mxu0 0
    %922 = vmatpush1.bf16.msra.mxu0 0
    %923 = vmatprep.subr.bf16.mxu0 0
    %924 = vmatpush1.bf16.msra.mxu0 0
    %925 = vmatprep.subr.bf16.mxu0 0
    %926 = vmatpush1.bf16.msra.mxu0 0
    %927 = vmatprep.subr.bf16.mxu0 0
    %928 = vmatpush1.bf16.msra.mxu0 0
    %929 = vmatprep.mubr.bf16.mxu0 0
    %930 = vmatmul.mubr.bf16.gmra.mrb[0].mxu0 %v895
    %v931 = vpop.f32.mrb[0].mxu0
    %v932 = vadd.f32 %v880, %v931
    %v933 = vpop.f32.mrb[0].mxu0
    %v934 = vpop.f32.mrb[0].mxu0
    %v935 = vpop.f32.mrb[0].mxu0
    %936 = vdwg.mxu0
    %v937 = vmax.f32 %v932, 0.0
    %v938 = vpack.c.bf16 %v937, %v937
    %v939 = vld [vmem:[%s13] sm:$0xf]
    %v940 = vld [vmem:[%s13 + $0x4] sm:$0xf]
    %v941 = vld [vmem:[%s13 + $0x8] sm:$0xf]
    %v942 = vld [vmem:[%s13 + $0xc] sm:$0xf]
    %v943 = vld [vmem:[#allocation14] sm:$0x1]
    %v945 = vlaneseq
    %v946 = vshrl.u32 %v945, 7
    %v947 = vsub.s32 0, %v946
    %v948 = vrot.slane %v943, %v947
    %v954 = vunpack.c.l.b16 %v939
    %v955 = vunpack.c.l.b16 %v940
    %v956 = vunpack.c.l.b16 %v941
    %v957 = vunpack.c.l.b16 %v942
    %v958 = vpack.c.b16 %v955, %v954
    %v959 = vpack.c.b16 %v957, %v956
    %v963 = vsel %vm471, %v938, 0
    %965 = vmatprep.subr.bf16.mxu0 0
    %966 = vmatpush1.bf16.msra.mxu0 %v958
    %967 = vmatprep.subr.bf16.mxu0 0
    %968 = vmatpush1.bf16.msra.mxu0 %v959
    %969 = vmatprep.subr.bf16.mxu0 0
    %970 = vmatpush1.bf16.msra.mxu0 0
    %971 = vmatprep.subr.bf16.mxu0 0
    %972 = vmatpush1.bf16.msra.mxu0 0
    %973 = vmatprep.subr.bf16.mxu0 0
    %974 = vmatpush1.bf16.msra.mxu0 0
    %975 = vmatprep.subr.bf16.mxu0 0
    %976 = vmatpush1.bf16.msra.mxu0 0
    %977 = vmatprep.subr.bf16.mxu0 0
    %978 = vmatpush1.bf16.msra.mxu0 0
    %979 = vmatprep.subr.bf16.mxu0 0
    %980 = vmatpush1.bf16.msra.mxu0 0
    %981 = vmatprep.subr.bf16.mxu0 0
    %982 = vmatpush1.bf16.msra.mxu0 0
    %983 = vmatprep.subr.bf16.mxu0 0
    %984 = vmatpush1.bf16.msra.mxu0 0
    %985 = vmatprep.subr.bf16.mxu0 0
    %986 = vmatpush1.bf16.msra.mxu0 0
    %987 = vmatprep.subr.bf16.mxu0 0
    %988 = vmatpush1.bf16.msra.mxu0 0
    %989 = vmatprep.subr.bf16.mxu0 0
    %990 = vmatpush1.bf16.msra.mxu0 0
    %991 = vmatprep.subr.bf16.mxu0 0
    %992 = vmatpush1.bf16.msra.mxu0 0
    %993 = vmatprep.subr.bf16.mxu0 0
    %994 = vmatpush1.bf16.msra.mxu0 0
    %995 = vmatprep.subr.bf16.mxu0 0
    %996 = vmatpush1.bf16.msra.mxu0 0
    %997 = vmatprep.mubr.bf16.mxu0 0
    %998 = vmatmul.mubr.bf16.gmra.mrb[0].mxu0 %v963
    %v999 = vpop.f32.mrb[0].mxu0
    %v1000 = vadd.f32 %v948, %v999
    %v1001 = vpop.f32.mrb[0].mxu0
    %v1002 = vpop.f32.mrb[0].mxu0
    %v1003 = vpop.f32.mrb[0].mxu0
    %1004 = vdwg.mxu0
    %v1005 = vmax.f32 %v1000, 0.0
    %v1006 = vpack.c.bf16 %v1005, %v1005
    %v1007 = vld [vmem:[%s15] sm:$0xf]
    %v1008 = vld [vmem:[%s15 + $0x4] sm:$0xf]
    %v1009 = vld [vmem:[%s15 + $0x8] sm:$0xf]
    %v1010 = vld [vmem:[%s15 + $0xc] sm:$0xf]
    %v1011 = vld [vmem:[%s16] sm:$0x1]
    %v1013 = vlaneseq
    %v1014 = vshrl.u32 %v1013, 7
    %v1015 = vsub.s32 0, %v1014
    %v1016 = vrot.slane %v1011, %v1015
    %v1022 = vunpack.c.l.b16 %v1007
    %v1023 = vunpack.c.l.b16 %v1008
    %v1024 = vunpack.c.l.b16 %v1009
    %v1025 = vunpack.c.l.b16 %v1010
    %v1026 = vpack.c.b16 %v1023, %v1022
    %v1027 = vpack.c.b16 %v1025, %v1024
    %v1031 = vsel %vm471, %v1006, 0
    %1033 = vmatprep.subr.bf16.mxu0 0
    %1034 = vmatpush1.bf16.msra.mxu0 %v1026
    %1035 = vmatprep.subr.bf16.mxu0 0
    %1036 = vmatpush1.bf16.msra.mxu0 %v1027
    %1037 = vmatprep.subr.bf16.mxu0 0
    %1038 = vmatpush1.bf16.msra.mxu0 0
    %1039 = vmatprep.subr.bf16.mxu0 0
    %1040 = vmatpush1.bf16.msra.mxu0 0
    %1041 = vmatprep.subr.bf16.mxu0 0
    %1042 = vmatpush1.bf16.msra.mxu0 0
    %1043 = vmatprep.subr.bf16.mxu0 0
    %1044 = vmatpush1.bf16.msra.mxu0 0
    %1045 = vmatprep.subr.bf16.mxu0 0
    %1046 = vmatpush1.bf16.msra.mxu0 0
    %1047 = vmatprep.subr.bf16.mxu0 0
    %1048 = vmatpush1.bf16.msra.mxu0 0
    %1049 = vmatprep.subr.bf16.mxu0 0
    %1050 = vmatpush1.bf16.msra.mxu0 0
    %1051 = vmatprep.subr.bf16.mxu0 0
    %1052 = vmatpush1.bf16.msra.mxu0 0
    %1053 = vmatprep.subr.bf16.mxu0 0
    %1054 = vmatpush1.bf16.msra.mxu0 0
    %1055 = vmatprep.subr.bf16.mxu0 0
    %1056 = vmatpush1.bf16.msra.mxu0 0
    %1057 = vmatprep.subr.bf16.mxu0 0
    %1058 = vmatpush1.bf16.msra.mxu0 0
    %1059 = vmatprep.subr.bf16.mxu0 0
    %1060 = vmatpush1.bf16.msra.mxu0 0
    %1061 = vmatprep.subr.bf16.mxu0 0
    %1062 = vmatpush1.bf16.msra.mxu0 0
    %1063 = vmatprep.subr.bf16.mxu0 0
    %1064 = vmatpush1.bf16.msra.mxu0 0
    %1065 = vmatprep.mubr.bf16.mxu0 0
    %1066 = vmatmul.mubr.bf16.gmra.mrb[0].mxu0 %v1031
    %v1067 = vpop.f32.mrb[0].mxu0
    %v1068 = vadd.f32 %v1016, %v1067
    %v1069 = vpop.f32.mrb[0].mxu0
    %v1070 = vpop.f32.mrb[0].mxu0
    %v1071 = vpop.f32.mrb[0].mxu0
    %1072 = vdwg.mxu0
    %v1073 = vmax.f32 %v1068, 0.0
    %v1074 = vpack.c.bf16 %v1073, %v1073
    %v1075 = vld [vmem:[%s17] sm:$0xf]
    %v1076 = vld [vmem:[%s17 + $0x4] sm:$0xf]
    %v1077 = vld [vmem:[%s17 + $0x8] sm:$0xf]
    %v1078 = vld [vmem:[%s17 + $0xc] sm:$0xf]
    %v1079 = vld [vmem:[%s18] sm:$0x1]
    %v1081 = vlaneseq
    %v1082 = vshrl.u32 %v1081, 7
    %v1083 = vsub.s32 0, %v1082
    %v1084 = vrot.slane %v1079, %v1083
    %v1090 = vunpack.c.l.b16 %v1075
    %v1091 = vunpack.c.l.b16 %v1076
    %v1092 = vunpack.c.l.b16 %v1077
    %v1093 = vunpack.c.l.b16 %v1078
    %v1094 = vpack.c.b16 %v1091, %v1090
    %v1095 = vpack.c.b16 %v1093, %v1092
    %v1099 = vsel %vm471, %v1074, 0
    %1101 = vmatprep.subr.bf16.mxu0 0
    %1102 = vmatpush1.bf16.msra.mxu0 %v1094
    %1103 = vmatprep.subr.bf16.mxu0 0
    %1104 = vmatpush1.bf16.msra.mxu0 %v1095
    %1105 = vmatprep.subr.bf16.mxu0 0
    %1106 = vmatpush1.bf16.msra.mxu0 0
    %1107 = vmatprep.subr.bf16.mxu0 0
    %1108 = vmatpush1.bf16.msra.mxu0 0
    %1109 = vmatprep.subr.bf16.mxu0 0
    %1110 = vmatpush1.bf16.msra.mxu0 0
    %1111 = vmatprep.subr.bf16.mxu0 0
    %1112 = vmatpush1.bf16.msra.mxu0 0
    %1113 = vmatprep.subr.bf16.mxu0 0
    %1114 = vmatpush1.bf16.msra.mxu0 0
    %1115 = vmatprep.subr.bf16.mxu0 0
    %1116 = vmatpush1.bf16.msra.mxu0 0
    %1117 = vmatprep.subr.bf16.mxu0 0
    %1118 = vmatpush1.bf16.msra.mxu0 0
    %1119 = vmatprep.subr.bf16.mxu0 0
    %1120 = vmatpush1.bf16.msra.mxu0 0
    %1121 = vmatprep.subr.bf16.mxu0 0
    %1122 = vmatpush1.bf16.msra.mxu0 0
    %1123 = vmatprep.subr.bf16.mxu0 0
    %1124 = vmatpush1.bf16.msra.mxu0 0
    %1125 = vmatprep.subr.bf16.mxu0 0
    %1126 = vmatpush1.bf16.msra.mxu0 0
    %1127 = vmatprep.subr.bf16.mxu0 0
    %1128 = vmatpush1.bf16.msra.mxu0 0
    %1129 = vmatprep.subr.bf16.mxu0 0
    %1130 = vmatpush1.bf16.msra.mxu0 0
    %1131 = vmatprep.subr.bf16.mxu0 0
    %1132 = vmatpush1.bf16.msra.mxu0 0
    %1133 = vmatprep.mubr.bf16.mxu0 0
    %1134 = vmatmul.mubr.bf16.gmra.mrb[0].mxu0 %v1099
    %v1135 = vpop.f32.mrb[0].mxu0
    %v1136 = vadd.f32 %v1084, %v1135
    %v1137 = vpop.f32.mrb[0].mxu0
    %v1138 = vpop.f32.mrb[0].mxu0
    %v1139 = vpop.f32.mrb[0].mxu0
    %1140 = vdwg.mxu0
    %vm1141 = vcmask 1041408
    %v1142 = vsel %vm1141, %v1136, -inf
    %1143 = vmax.xlane.f32.xlu0 %v1142
    %v1144 = vpop.xlane.xlu0 %1143
    %v1145 = vsub.f32 %v1136, %v1144
    %v1146 = vmul.f32 %v1145, 1.442695
    %v1147 = vpow.pop %v1146
    %v1148 = vsel %vm1141, %v1147, 0.0
    %1149 = vadd.xlane.f32.xlu0 %v1148
    %v1150 = vpop.xlane.xlu0 %1149
    %v1151 = vlog2.pop %v1150
    %v1152 = vmul.f32 %v1151, 0.6931472
    %1153 = vst [vmem:[#allocation16] sm:$0x3] %v1136
    %v1154 = vsub.f32 %v1145, %v1152
    %1155 = vst [vmem:[#allocation17] sm:$0x3] %v1154
    // Predicated region
    $region110: #{tpu_custom_call.1} parent=1 // pred_check
      _
    $region111: #{tpu_custom_call.1} parent=1 // pred_check_branch
      %1157 = sbr.rel (0) target = $region113
    $region112: #{tpu_custom_call.1} parent=1 // pred_region
      %s1159 = ssub.s32 32, 32
      %1160 = vsyncadd [#allocation4], %s1159
      %s1162 = sshll.u32 [#allocation16], 4
      %s1163 = int_to_ptr.vmem [resolvable:$true] %s1162
      %1165 = dma.vmem_to_hbm [thread:$0]  %s1163, 32, %s19, [#allocation4]
    $region113: #{tpu_custom_call.1} parent=1 // pred_fallthru
      _
    // Predicated region
    $region114: #{tpu_custom_call.1} parent=1 // pred_check
      _
    $region115: #{tpu_custom_call.1} parent=1 // pred_check_branch
      %1167 = sbr.rel (0) target = $region117
    $region116: #{tpu_custom_call.1} parent=1 // pred_region
      %s1169 = ssub.s32 32, 32
      %1170 = vsyncadd [#allocation18], %s1169
      %s1172 = sshll.u32 [#allocation17], 4
      %s1173 = int_to_ptr.vmem [resolvable:$true] %s1172
      %1175 = dma.vmem_to_hbm [thread:$0]  %s1173, 32, %s20, [#allocation18]
    $region117: #{tpu_custom_call.1} parent=1 // pred_fallthru
      _
    // Predicated region
    $region118: #{tpu_custom_call.1} parent=1 // pred_check
      _
    $region119: #{tpu_custom_call.1} parent=1 // pred_check_branch
      %1177 = sbr.rel (0) target = $region121
    $region120: #{tpu_custom_call.1} parent=1 // pred_region
      %1178 = dma.done [#allocation4], 32
    $region121: #{tpu_custom_call.1} parent=1 // pred_fallthru
      _
    // Predicated region
    $region122: #{tpu_custom_call.1} parent=1 // pred_check
      _
    $region123: #{tpu_custom_call.1} parent=1 // pred_check_branch
      %1180 = sbr.rel (0) target = $region125
    $region124: #{tpu_custom_call.1} parent=1 // pred_region
      %1181 = dma.done [#allocation18], 32
    $region125: #{tpu_custom_call.1} parent=1 // pred_fallthru
      _
    %1182 = vsyncpa [#allocation3], 1
    %1183 = vsyncpa [#allocation6], 1
    %1184 = vsyncpa [#allocation9], 1
    %1185 = vsyncpa [#allocation12], 1
    %1186 = vsyncpa [#allocation15], 1
    %1187 = vsyncpa [#allocation4], 1
    %1188 = vsyncpa [#allocation18], 1

</llo_original>
